<compile_context>
chip_gen: v7x
topology: tpu7x:2x2x1
jax: 0.10.0
libtpu: 0.0.40
codegen_flags: <defaults>
</compile_context>

<pallas_src>
import jax
import jax.numpy as jnp
import numpy as np
from jax import lax
from jax.experimental import pallas as pl
from jax.experimental.pallas import tpu as pltpu

# dot_general dimension numbers (no materialized .T transposes):
_TN = (((0,), (0,)), ((), ()))   # contract dim 0 of both operands (lhs "transposed")
_NT = (((1,), (1,)), ((), ()))   # contract dim 1 of both operands (rhs "transposed")


def _mha_kernel(q_ref, k_ref, v_ref, w_ref, b_ref, rid_s_ref, rid_l_ref, out_ref):
    """One grid step == (batch element, group of G image rows).

    q/k/v/out refs : (1, C, GW) NCHW-flat blocks, GW = G*W lanes (lane-dense).
    w_ref          : (3, C, C) stacked [wq, wk, wv] (c_out, c_in), resident.
    b_ref          : (3, C, 1) stacked biases, resident.
    rid_s_ref      : (GW, 1) int32 image-row id of each query position.
    rid_l_ref      : (1, GW) int32 image-row id of each key position.
    """
    x_q = q_ref[0]                                                     # (C, GW); also the residual

    # 1x1 conv == per-pixel linear in NCHW-flat layout: (C, C) @ (C, GW).
    # Bias broadcasts along the lane (GW) axis.
    qp = jnp.dot(w_ref[0], x_q,      preferred_element_type=jnp.float32) + b_ref[0]
    kp = jnp.dot(w_ref[1], k_ref[0], preferred_element_type=jnp.float32) + b_ref[1]
    vp = jnp.dot(w_ref[2], v_ref[0], preferred_element_type=jnp.float32) + b_ref[2]

    # Dense, lane-aligned score tile: scores[qi, ki] = sum_c qp[c, qi] * kp[c, ki]
    # (== q @ k^T in NHWC terms; per the module: no 1/sqrt(d) scale, no softmax).
    scores = lax.dot_general(qp, kp, _TN, preferred_element_type=jnp.float32)

    # Block-diagonal mask: a pixel only attends within its own image row.
    mask = rid_s_ref[...] == rid_l_ref[...]                            # (GW,1)==(1,GW) -> (GW,GW)
    attn = jnp.where(mask, scores, 0.0)

    # out[c, qi] = sum_k vp[c, k] * attn[qi, k]   (== attn @ v in NHWC terms)
    out = lax.dot_general(vp, attn, _NT, preferred_element_type=jnp.float32)

    # Residual add + single full-width (lane-dense) store for the whole group.
    out_ref[0] = (out + x_q).astype(out_ref.dtype)


def _pick_group_rows(H, W, target_lanes):
    """Number of image rows G per grid step.  G divides H; G*W is either the full
    H*W (block == full array, exempt from the 128-lane rule) or a multiple of 128."""
    if H * W <= max(target_lanes, 128):
        return H
    aligned = [g for g in range(1, H + 1) if H % g == 0 and (g * W) % 128 == 0]
    if not aligned:
        return H                      # fall back to the whole image per step
    under = [g for g in aligned if g * W <= target_lanes]
    return max(under) if under else min(aligned)


def multi_head_attention(q, k, v, wq, bq, wk, bk, wv, bv, *, target_lanes=512):
    """q, k, v: (B, C, H, W) float32 (NCHW, like the PyTorch module).
    wq/wk/wv: (C, C) 1x1-conv weights (c_out, c_in); bq/bk/bv: (C,)."""
    B, C, H, W = q.shape
    HW = H * W
    G = _pick_group_rows(H, W, target_lanes)
    GW = G * W
    n_groups = H // G

    # Free (contiguous) reshapes only — no HBM transpose/copy passes.
    q2 = q.reshape(B, C, HW)
    k2 = k.reshape(B, C, HW)
    v2 = v.reshape(B, C, HW)

    w_all = jnp.stack([wq, wk, wv])                       # (3, C, C)
    b_all = jnp.stack([bq, bk, bv]).reshape(3, C, 1)      # (3, C, 1)

    # Image-row id per flattened position inside a group (same pattern for every
    # group).  Precomputed on host to avoid in-kernel integer division.
    rid = jnp.arange(GW, dtype=jnp.int32) // W
    rid_s = rid.reshape(GW, 1)
    rid_l = rid.reshape(1, GW)

    seq_spec = pl.BlockSpec((1, C, GW), lambda b, g: (b, 0, g))
    w_spec   = pl.BlockSpec((3, C, C),  lambda b, g: (0, 0, 0))
    b_spec   = pl.BlockSpec((3, C, 1),  lambda b, g: (0, 0, 0))
    rs_spec  = pl.BlockSpec((GW, 1),    lambda b, g: (0, 0))
    rl_spec  = pl.BlockSpec((1, GW),    lambda b, g: (0, 0))

    # Rough per-step VMEM budget: q/k/v/out double-buffered, resident weights,
    # projected slabs and the (GW,GW) score/mask intermediates; clamp to [32,100] MiB.
    blk = C * GW * 4
    need = (2 * 4 * blk
            + 2 * (3 * C * C + 3 * C) * 4
            + 3 * blk
            + 2 * GW * GW * 4
            + 2 * GW * 4)
    vmem_limit = int(min(100 * 2**20, max(32 * 2**20, 2 * need)))

    out = pl.pallas_call(
        _mha_kernel,
        out_shape=jax.ShapeDtypeStruct((B, C, HW), q.dtype),
        grid_spec=pltpu.PrefetchScalarGridSpec(
            num_scalar_prefetch=0,
            grid=(B, n_groups),
            in_specs=[seq_spec, seq_spec, seq_spec, w_spec, b_spec, rs_spec, rl_spec],
            out_specs=seq_spec,
        ),
        compiler_params=pltpu.CompilerParams(
            # Both axes are fully independent -> shard across TensorCores.
            dimension_semantics=("parallel", "parallel"),
            vmem_limit_bytes=vmem_limit,
        ),
    )(q2, k2, v2, w_all, b_all, rid_s, rid_l)

    return out.reshape(B, C, H, W)


def _reference(q, k, v, wq, bq, wk, bk, wv, bv):
    # Pure-JAX reference replicating the PyTorch forward exactly (f32 matmuls).
    hi = lax.Precision.HIGHEST

    def conv1x1(x, w, b):  # x: (B, C, H, W)
        return jnp.einsum('bchw,oc->bohw', x, w, precision=hi) + b[None, :, None, None]

    residual = q
    qp = jnp.transpose(conv1x1(q, wq, bq), (0, 2, 3, 1))  # (B, H, W, C)
    kp = jnp.transpose(conv1x1(k, wk, bk), (0, 2, 3, 1))
    vp = jnp.transpose(conv1x1(v, wv, bv), (0, 2, 3, 1))
    attn = jnp.einsum('bhqc,bhkc->bhqk', qp, kp, precision=hi)   # no scale, no softmax
    out = jnp.einsum('bhqk,bhkc->bhqc', attn, vp, precision=hi)
    return jnp.transpose(out, (0, 3, 1, 2)) + residual


if __name__ == "__main__":
    def run_case(key, B, C, H, W, target_lanes):
        ks = jax.random.split(key, 9)
        q = jax.random.normal(ks[0], (B, C, H, W), dtype=jnp.float32)
        k = jax.random.normal(ks[1], (B, C, H, W), dtype=jnp.float32)
        v = jax.random.normal(ks[2], (B, C, H, W), dtype=jnp.float32)
        wq = jax.random.normal(ks[3], (C, C), dtype=jnp.float32) * 0.2
        wk = jax.random.normal(ks[4], (C, C), dtype=jnp.float32) * 0.2
        wv = jax.random.normal(ks[5], (C, C), dtype=jnp.float32) * 0.2
        bq = jax.random.normal(ks[6], (C,), dtype=jnp.float32) * 0.1
        bk = jax.random.normal(ks[7], (C,), dtype=jnp.float32) * 0.1
        bv = jax.random.normal(ks[8], (C,), dtype=jnp.float32) * 0.1

        out = jax.block_until_ready(
            multi_head_attention(q, k, v, wq, bq, wk, bk, wv, bv,
                                 target_lanes=target_lanes))
        ref = jax.block_until_ready(_reference(q, k, v, wq, bq, wk, bk, wv, bv))
        np.testing.assert_allclose(np.asarray(out), np.asarray(ref),
                                   rtol=5e-4, atol=5e-4)

    key = jax.random.PRNGKey(0)
    k1, k2 = jax.random.split(key)
    # Primary case: Conv2d(size=4) on 16x16 maps -> one 256-lane group per batch step.
    run_case(k1, B=2, C=4, H=16, W=16, target_lanes=512)
    # Tiled case: B=1 exercises the extra parallel group axis (4 groups of 128 lanes).
    run_case(k2, B=1, C=8, H=32, W=16, target_lanes=128)

    print("KERNEL_OK")
</pallas_src>

<mosaic_0001>
module attributes {stable_mosaic.version = 11 : i64} {
  func.func @_mha_kernel(%arg0: i32, %arg1: i32, %arg2: memref<1x4x256xf32, #tpu.memory_space<vmem>>, %arg3: memref<1x4x256xf32, #tpu.memory_space<vmem>>, %arg4: memref<1x4x256xf32, #tpu.memory_space<vmem>>, %arg5: memref<3x4x4xf32, #tpu.memory_space<vmem>>, %arg6: memref<3x4x1xf32, #tpu.memory_space<vmem>>, %arg7: memref<256x1xi32, #tpu.memory_space<vmem>>, %arg8: memref<1x256xi32, #tpu.memory_space<vmem>>, %arg9: memref<1x4x256xf32, #tpu.memory_space<vmem>>) attributes {dimension_semantics = [#tpu.dimension_semantics<parallel>, #tpu.dimension_semantics<parallel>], iteration_bounds = array<i64: 2, 1>, scalar_prefetch = 0 : i64, scratch_operands = 0 : i64, tpu.core_type = #tpu.core_type<tc>, window_params = [{transform_indices = @transform_0, window_bounds = array<i64: 1, 4, 256>}, {transform_indices = @transform_1, window_bounds = array<i64: 1, 4, 256>}, {transform_indices = @transform_2, window_bounds = array<i64: 1, 4, 256>}, {pipeline_mode = #tpu.pipeline_mode<synchronous>, transform_indices = @transform_3, window_bounds = array<i64: 3, 4, 4>}, {pipeline_mode = #tpu.pipeline_mode<synchronous>, transform_indices = @transform_4, window_bounds = array<i64: 3, 4, 1>}, {pipeline_mode = #tpu.pipeline_mode<synchronous>, transform_indices = @transform_5, window_bounds = array<i64: 256, 1>}, {pipeline_mode = #tpu.pipeline_mode<synchronous>, transform_indices = @transform_6, window_bounds = array<i64: 1, 256>}, {transform_indices = @transform_7, window_bounds = array<i64: 1, 4, 256>}]} {
    %c0 = arith.constant 0 : index
    %c0_0 = arith.constant 0 : index
    %c0_1 = arith.constant 0 : index
    %0 = vector.load %arg2[%c0, %c0_0, %c0_1] : memref<1x4x256xf32, #tpu.memory_space<vmem>>, vector<1x4x256xf32>
    %1 = vector.shape_cast %0 : vector<1x4x256xf32> to vector<4x256xf32>
    %c0_2 = arith.constant 0 : index
    %c0_3 = arith.constant 0 : index
    %c0_4 = arith.constant 0 : index
    %2 = vector.load %arg5[%c0_2, %c0_3, %c0_4] : memref<3x4x4xf32, #tpu.memory_space<vmem>>, vector<1x4x4xf32>
    %3 = vector.shape_cast %2 : vector<1x4x4xf32> to vector<4x4xf32>
    %cst = arith.constant dense<0.000000e+00> : vector<4x256xf32>
    %4 = tpu.matmul %3, %1, %cst {dimension_numbers = #tpu.dot_dimension_numbers<[1], [0], [0], [1], [0, 0, 1, 1], [], []>} : vector<4x4xf32>, vector<4x256xf32>, vector<4x256xf32> -> vector<4x256xf32>
    %c0_5 = arith.constant 0 : index
    %c0_6 = arith.constant 0 : index
    %c0_7 = arith.constant 0 : index
    %5 = vector.load %arg6[%c0_5, %c0_6, %c0_7] : memref<3x4x1xf32, #tpu.memory_space<vmem>>, vector<1x4x1xf32>
    %6 = vector.shape_cast %5 : vector<1x4x1xf32> to vector<4x1xf32>
    %7 = vector.broadcast %6 : vector<4x1xf32> to vector<4x256xf32>
    %8 = arith.addf %4, %7 : vector<4x256xf32>
    %c1 = arith.constant 1 : index
    %c0_8 = arith.constant 0 : index
    %c0_9 = arith.constant 0 : index
    %9 = vector.load %arg5[%c1, %c0_8, %c0_9] : memref<3x4x4xf32, #tpu.memory_space<vmem>>, vector<1x4x4xf32>
    %10 = vector.shape_cast %9 : vector<1x4x4xf32> to vector<4x4xf32>
    %c0_10 = arith.constant 0 : index
    %c0_11 = arith.constant 0 : index
    %c0_12 = arith.constant 0 : index
    %11 = vector.load %arg3[%c0_10, %c0_11, %c0_12] : memref<1x4x256xf32, #tpu.memory_space<vmem>>, vector<1x4x256xf32>
    %12 = vector.shape_cast %11 : vector<1x4x256xf32> to vector<4x256xf32>
    %cst_13 = arith.constant dense<0.000000e+00> : vector<4x256xf32>
    %13 = tpu.matmul %10, %12, %cst_13 {dimension_numbers = #tpu.dot_dimension_numbers<[1], [0], [0], [1], [0, 0, 1, 1], [], []>} : vector<4x4xf32>, vector<4x256xf32>, vector<4x256xf32> -> vector<4x256xf32>
    %c1_14 = arith.constant 1 : index
    %c0_15 = arith.constant 0 : index
    %c0_16 = arith.constant 0 : index
    %14 = vector.load %arg6[%c1_14, %c0_15, %c0_16] : memref<3x4x1xf32, #tpu.memory_space<vmem>>, vector<1x4x1xf32>
    %15 = vector.shape_cast %14 : vector<1x4x1xf32> to vector<4x1xf32>
    %16 = vector.broadcast %15 : vector<4x1xf32> to vector<4x256xf32>
    %17 = arith.addf %13, %16 : vector<4x256xf32>
    %c2 = arith.constant 2 : index
    %c0_17 = arith.constant 0 : index
    %c0_18 = arith.constant 0 : index
    %18 = vector.load %arg5[%c2, %c0_17, %c0_18] : memref<3x4x4xf32, #tpu.memory_space<vmem>>, vector<1x4x4xf32>
    %19 = vector.shape_cast %18 : vector<1x4x4xf32> to vector<4x4xf32>
    %c0_19 = arith.constant 0 : index
    %c0_20 = arith.constant 0 : index
    %c0_21 = arith.constant 0 : index
    %20 = vector.load %arg4[%c0_19, %c0_20, %c0_21] : memref<1x4x256xf32, #tpu.memory_space<vmem>>, vector<1x4x256xf32>
    %21 = vector.shape_cast %20 : vector<1x4x256xf32> to vector<4x256xf32>
    %cst_22 = arith.constant dense<0.000000e+00> : vector<4x256xf32>
    %22 = tpu.matmul %19, %21, %cst_22 {dimension_numbers = #tpu.dot_dimension_numbers<[1], [0], [0], [1], [0, 0, 1, 1], [], []>} : vector<4x4xf32>, vector<4x256xf32>, vector<4x256xf32> -> vector<4x256xf32>
    %c2_23 = arith.constant 2 : index
    %c0_24 = arith.constant 0 : index
    %c0_25 = arith.constant 0 : index
    %23 = vector.load %arg6[%c2_23, %c0_24, %c0_25] : memref<3x4x1xf32, #tpu.memory_space<vmem>>, vector<1x4x1xf32>
    %24 = vector.shape_cast %23 : vector<1x4x1xf32> to vector<4x1xf32>
    %25 = vector.broadcast %24 : vector<4x1xf32> to vector<4x256xf32>
    %26 = arith.addf %22, %25 : vector<4x256xf32>
    %cst_26 = arith.constant dense<0.000000e+00> : vector<256x256xf32>
    %27 = tpu.matmul %8, %17, %cst_26 {dimension_numbers = #tpu.dot_dimension_numbers<[0], [0], [1], [1], [0, 1, 1, 1], [], []>} : vector<4x256xf32>, vector<4x256xf32>, vector<256x256xf32> -> vector<256x256xf32>
    %c0_27 = arith.constant 0 : index
    %c0_28 = arith.constant 0 : index
    %28 = vector.load %arg7[%c0_27, %c0_28] : memref<256x1xi32, #tpu.memory_space<vmem>>, vector<256x1xi32>
    %c0_29 = arith.constant 0 : index
    %c0_30 = arith.constant 0 : index
    %29 = vector.load %arg8[%c0_29, %c0_30] : memref<1x256xi32, #tpu.memory_space<vmem>>, vector<1x256xi32>
    %30 = vector.broadcast %28 : vector<256x1xi32> to vector<256x256xi32>
    %31 = vector.broadcast %29 : vector<1x256xi32> to vector<256x256xi32>
    %32 = arith.cmpi eq, %30, %31 : vector<256x256xi32>
    %cst_31 = arith.constant 0.000000e+00 : f32
    %33 = vector.broadcast %cst_31 : f32 to vector<256x256xf32>
    %34 = arith.select %32, %27, %33 : vector<256x256xi1>, vector<256x256xf32>
    %cst_32 = arith.constant dense<0.000000e+00> : vector<4x256xf32>
    %35 = tpu.matmul %26, %34, %cst_32 {dimension_numbers = #tpu.dot_dimension_numbers<[1], [1], [0], [0], [0, 0, 1, 0], [], []>} : vector<4x256xf32>, vector<256x256xf32>, vector<4x256xf32> -> vector<4x256xf32>
    %36 = arith.addf %35, %1 : vector<4x256xf32>
    %c0_33 = arith.constant 0 : index
    %c0_34 = arith.constant 0 : index
    %c0_35 = arith.constant 0 : index
    %37 = vector.load %arg9[%c0_33, %c0_34, %c0_35] : memref<1x4x256xf32, #tpu.memory_space<vmem>>, vector<1x4x256xf32>
    %38 = vector.shape_cast %37 : vector<1x4x256xf32> to vector<4x256xf32>
    %39 = vector.shape_cast %36 : vector<4x256xf32> to vector<1x4x256xf32>
    tpu.vector_store %arg9[%c0_33, %c0_34, %c0_35], %39 {strides = array<i32>} : memref<1x4x256xf32, #tpu.memory_space<vmem>>, vector<1x4x256xf32>,
    return
  }
  func.func @transform_0(%arg0: i32, %arg1: i32) -> (i32, i32, i32) {
    %c0_i32 = arith.constant 0 : i32
    %c0_i32_0 = arith.constant 0 : i32
    return %arg0, %c0_i32, %arg1 : i32, i32, i32
  }
  func.func @transform_1(%arg0: i32, %arg1: i32) -> (i32, i32, i32) {
    %c0_i32 = arith.constant 0 : i32
    %c0_i32_0 = arith.constant 0 : i32
    return %arg0, %c0_i32, %arg1 : i32, i32, i32
  }
  func.func @transform_2(%arg0: i32, %arg1: i32) -> (i32, i32, i32) {
    %c0_i32 = arith.constant 0 : i32
    %c0_i32_0 = arith.constant 0 : i32
    return %arg0, %c0_i32, %arg1 : i32, i32, i32
  }
  func.func @transform_3(%arg0: i32, %arg1: i32) -> (i32, i32, i32) {
    %c0_i32 = arith.constant 0 : i32
    %c0_i32_0 = arith.constant 0 : i32
    %c0_i32_1 = arith.constant 0 : i32
    %c0_i32_2 = arith.constant 0 : i32
    return %c0_i32, %c0_i32_0, %c0_i32_1 : i32, i32, i32
  }
  func.func @transform_4(%arg0: i32, %arg1: i32) -> (i32, i32, i32) {
    %c0_i32 = arith.constant 0 : i32
    %c0_i32_0 = arith.constant 0 : i32
    %c0_i32_1 = arith.constant 0 : i32
    %c0_i32_2 = arith.constant 0 : i32
    return %c0_i32, %c0_i32_0, %c0_i32_1 : i32, i32, i32
  }
  func.func @transform_5(%arg0: i32, %arg1: i32) -> (i32, i32) {
    %c0_i32 = arith.constant 0 : i32
    %c0_i32_0 = arith.constant 0 : i32
    %c0_i32_1 = arith.constant 0 : i32
    return %c0_i32, %c0_i32_0 : i32, i32
  }
  func.func @transform_6(%arg0: i32, %arg1: i32) -> (i32, i32) {
    %c0_i32 = arith.constant 0 : i32
    %c0_i32_0 = arith.constant 0 : i32
    %c0_i32_1 = arith.constant 0 : i32
    return %c0_i32, %c0_i32_0 : i32, i32
  }
  func.func @transform_7(%arg0: i32, %arg1: i32) -> (i32, i32, i32) {
    %c0_i32 = arith.constant 0 : i32
    %c0_i32_0 = arith.constant 0 : i32
    return %arg0, %c0_i32, %arg1 : i32, i32, i32
  }
}

</mosaic_0001>

<llo_original>
// kernel: tpu_custom_call.1
$region0: #{tpu_custom_call.1}
  #allocation0 [shape = 'u32[]', space=smem, size = 0x4, offset = 0x4, fixed_abs, tag = 'smem constant byte address 0x4 - core index']
  #allocation1 [shape = 'u32[144,128]{1,0:T(1,128)}', space=vmem, size = 0x12000, scoped, tag = 'internal scratch']
  %s0 = inlined_call_operand.vmem [shape: f32[2,4,256], index: 0, kind: input, shape index: {}]
  %s1 = inlined_call_operand.vmem [shape: f32[2,4,256], index: 1, kind: input, shape index: {}]
  %s2 = inlined_call_operand.vmem [shape: f32[2,4,256], index: 2, kind: input, shape index: {}]
  %s3 = inlined_call_operand.vmem [shape: f32[3,4,4], index: 3, kind: input, shape index: {}]
  %s4 = inlined_call_operand.vmem [shape: f32[3,4,1], index: 4, kind: input, shape index: {}]
  %s5 = inlined_call_operand.vmem [shape: s32[256,1], index: 5, kind: input, shape index: {}]
  %s6 = inlined_call_operand.vmem [shape: s32[1,256], index: 6, kind: input, shape index: {}]
  %s7 = inlined_call_operand.hbm [shape: f32[2,4,256], index: 7, kind: output, shape index: {}]
  %s8 = sld [smem:[#allocation0]]
  $region61: #{tpu_custom_call.1} parent=0
    _
  %s10 = ssub.s32 1, %s8
  %s11 = scalar_select 0, %s10, %s8
  $region1: #{tpu_custom_call.1} parent=0
    #allocation2 [shape = 'u8[8192]{0}', space=vmem, size = 0x2000, scoped, tag = 'output window, operand 0']
    #allocation3 [shape = 's32[2]{0}', space=sflag, size = 0x8, scoped, tag = 'scoped memory for tpu_custom_call.1']
    %12 = vsyncpa [#allocation3], 0
    %s13 = scalar_lea.sflag [#allocation3], 1
    %14 = vsyncpa %s13, 0
    loop: start=0, step=1, limit=4
    $region2: #{tpu_custom_call.1} parent=1 // loop_pre_header
      _
    $region3: #{tpu_custom_call.1} parent=1 // loop_header
      %s16 = sphi 0, %s20
      %p17 = scmp.ge.s32.totalorder %s16, 4
      %s23 = sphi 0, %s35
      %s24 = sphi 0, %s31
      %s25 = sphi 0, %s23
      %s26 = sphi 0, %s24
      %s27 = sphi 0, %s25
      %s28 = sphi 0, %s26
      %s40 = sphi 0, %s42
      %s43 = sphi 0, %s40
      %s44 = sphi 0, %s43
      %s60 = sphi 0, %s44
      %s68 = sphi 0, %s70
      %s71 = sphi 0, %s68
      %s72 = sphi 0, %s71
      %s88 = sphi 0, %s72
      %s96 = sphi 0, %s98
      %s99 = sphi 0, %s96
      %s100 = sphi 0, %s99
      %s116 = sphi 0, %s100
      %s120 = sphi 0, %s120
      %s122 = sphi 0, %s120
      %s123 = sphi 0, %s122
      %s137 = sphi 0, %s123
      %s141 = sphi 0, %s141
      %s143 = sphi 0, %s141
      %s144 = sphi 0, %s143
      %s158 = sphi 0, %s144
      %s162 = sphi 0, %s162
      %s164 = sphi 0, %s162
      %s165 = sphi 0, %s164
      %s179 = sphi 0, %s165
      %s183 = sphi 0, %s183
      %s185 = sphi 0, %s183
      %s186 = sphi 0, %s185
      %s200 = sphi 0, %s186
      %s208 = sphi 0, %s210
      %s211 = sphi 0, %s208
      %s212 = sphi 0, %s211
      %s228 = sphi 0, %s212
    $region4: #{tpu_custom_call.1} parent=1 // loop_header_branch
      %19 = sbr.rel (%p17) target = $region8
    $region5: #{tpu_custom_call.1} parent=1 // loop_body
      %s21 = ssub.s32 %s16, 1
      %s22 = ssub.s32 %s16, 2
      %s29 = sadd.s32 1, %s24
      %p30 = scmp.ge.s32.totalorder %s29, 1
      %s31 = scalar_select %p30, 0, %s29
      %s32 = sadd.s32 1, %s23
      %s33 = scalar_select %p30, %s32, %s23
      %p34 = scmp.ge.s32.totalorder %s33, 2
      %s35 = scalar_select %p34, 0, %s33
      %s36 = ssub.s32 %s23, %s35
      %s37 = ssub.s32 %s24, %s31
      %s38 = sor.u32 %s36, %s37
      %p39 = scmp.eq.s32.totalorder %s38, 0
      %s41 = sadd.s32 %s40, 1
      %s42 = scalar_select %p39, %s40, %s41
      %p45 = pneg %p39
      %p46 = scmp.eq.s32.totalorder %s16, 1
      %p47 = por %p45, %p46
      %p48 = scmp.ne.s32.totalorder %s40, %s43
      %p49 = scmp.eq.s32.totalorder %s16, 0
      %p50 = por %p48, %p49
      %p51 = scmp.ne.s32.totalorder %s40, %s43
      %p52 = scmp.eq.s32.totalorder %s21, 1
      %p53 = por %p51, %p52
      %p54 = scmp.ne.s32.totalorder %s43, %s44
      %p55 = scmp.eq.s32.totalorder %s21, 0
      %p56 = por %p54, %p55
      %p57 = scmp.ne.s32.totalorder %s43, %s44
      %p58 = scmp.eq.s32.totalorder %s22, 1
      %p59 = por %p57, %p58
      %p61 = scmp.ne.s32.totalorder %s44, %s60
      %p62 = scmp.eq.s32.totalorder %s22, 0
      %p63 = por %p61, %p62
      %s64 = ssub.s32 %s23, %s35
      %s65 = ssub.s32 %s24, %s31
      %s66 = sor.u32 %s64, %s65
      %p67 = scmp.eq.s32.totalorder %s66, 0
      %s69 = sadd.s32 %s68, 1
      %s70 = scalar_select %p67, %s68, %s69
      %p73 = pneg %p67
      %p74 = scmp.eq.s32.totalorder %s16, 1
      %p75 = por %p73, %p74
      %p76 = scmp.ne.s32.totalorder %s68, %s71
      %p77 = scmp.eq.s32.totalorder %s16, 0
      %p78 = por %p76, %p77
      %p79 = scmp.ne.s32.totalorder %s68, %s71
      %p80 = scmp.eq.s32.totalorder %s21, 1
      %p81 = por %p79, %p80
      %p82 = scmp.ne.s32.totalorder %s71, %s72
      %p83 = scmp.eq.s32.totalorder %s21, 0
      %p84 = por %p82, %p83
      %p85 = scmp.ne.s32.totalorder %s71, %s72
      %p86 = scmp.eq.s32.totalorder %s22, 1
      %p87 = por %p85, %p86
      %p89 = scmp.ne.s32.totalorder %s72, %s88
      %p90 = scmp.eq.s32.totalorder %s22, 0
      %p91 = por %p89, %p90
      %s92 = ssub.s32 %s23, %s35
      %s93 = ssub.s32 %s24, %s31
      %s94 = sor.u32 %s92, %s93
      %p95 = scmp.eq.s32.totalorder %s94, 0
      %s97 = sadd.s32 %s96, 1
      %s98 = scalar_select %p95, %s96, %s97
      %p101 = pneg %p95
      %p102 = scmp.eq.s32.totalorder %s16, 1
      %p103 = por %p101, %p102
      %p104 = scmp.ne.s32.totalorder %s96, %s99
      %p105 = scmp.eq.s32.totalorder %s16, 0
      %p106 = por %p104, %p105
      %p107 = scmp.ne.s32.totalorder %s96, %s99
      %p108 = scmp.eq.s32.totalorder %s21, 1
      %p109 = por %p107, %p108
      %p110 = scmp.ne.s32.totalorder %s99, %s100
      %p111 = scmp.eq.s32.totalorder %s21, 0
      %p112 = por %p110, %p111
      %p113 = scmp.ne.s32.totalorder %s99, %s100
      %p114 = scmp.eq.s32.totalorder %s22, 1
      %p115 = por %p113, %p114
      %p117 = scmp.ne.s32.totalorder %s100, %s116
      %p118 = scmp.eq.s32.totalorder %s22, 0
      %p119 = por %p117, %p118
      %s121 = sadd.s32 %s120, 1
      %p124 = scmp.eq.s32.totalorder %s16, 1
      %p125 = scmp.ne.s32.totalorder %s120, %s122
      %p126 = scmp.eq.s32.totalorder %s16, 0
      %p127 = por %p125, %p126
      %p128 = scmp.ne.s32.totalorder %s120, %s122
      %p129 = scmp.eq.s32.totalorder %s21, 1
      %p130 = por %p128, %p129
      %p131 = scmp.ne.s32.totalorder %s122, %s123
      %p132 = scmp.eq.s32.totalorder %s21, 0
      %p133 = por %p131, %p132
      %p134 = scmp.ne.s32.totalorder %s122, %s123
      %p135 = scmp.eq.s32.totalorder %s22, 1
      %p136 = por %p134, %p135
      %p138 = scmp.ne.s32.totalorder %s123, %s137
      %p139 = scmp.eq.s32.totalorder %s22, 0
      %p140 = por %p138, %p139
      %s142 = sadd.s32 %s141, 1
      %p145 = scmp.eq.s32.totalorder %s16, 1
      %p146 = scmp.ne.s32.totalorder %s141, %s143
      %p147 = scmp.eq.s32.totalorder %s16, 0
      %p148 = por %p146, %p147
      %p149 = scmp.ne.s32.totalorder %s141, %s143
      %p150 = scmp.eq.s32.totalorder %s21, 1
      %p151 = por %p149, %p150
      %p152 = scmp.ne.s32.totalorder %s143, %s144
      %p153 = scmp.eq.s32.totalorder %s21, 0
      %p154 = por %p152, %p153
      %p155 = scmp.ne.s32.totalorder %s143, %s144
      %p156 = scmp.eq.s32.totalorder %s22, 1
      %p157 = por %p155, %p156
      %p159 = scmp.ne.s32.totalorder %s144, %s158
      %p160 = scmp.eq.s32.totalorder %s22, 0
      %p161 = por %p159, %p160
      %s163 = sadd.s32 %s162, 1
      %p166 = scmp.eq.s32.totalorder %s16, 1
      %p167 = scmp.ne.s32.totalorder %s162, %s164
      %p168 = scmp.eq.s32.totalorder %s16, 0
      %p169 = por %p167, %p168
      %p170 = scmp.ne.s32.totalorder %s162, %s164
      %p171 = scmp.eq.s32.totalorder %s21, 1
      %p172 = por %p170, %p171
      %p173 = scmp.ne.s32.totalorder %s164, %s165
      %p174 = scmp.eq.s32.totalorder %s21, 0
      %p175 = por %p173, %p174
      %p176 = scmp.ne.s32.totalorder %s164, %s165
      %p177 = scmp.eq.s32.totalorder %s22, 1
      %p178 = por %p176, %p177
      %p180 = scmp.ne.s32.totalorder %s165, %s179
      %p181 = scmp.eq.s32.totalorder %s22, 0
      %p182 = por %p180, %p181
      %s184 = sadd.s32 %s183, 1
      %p187 = scmp.eq.s32.totalorder %s16, 1
      %p188 = scmp.ne.s32.totalorder %s183, %s185
      %p189 = scmp.eq.s32.totalorder %s16, 0
      %p190 = por %p188, %p189
      %p191 = scmp.ne.s32.totalorder %s183, %s185
      %p192 = scmp.eq.s32.totalorder %s21, 1
      %p193 = por %p191, %p192
      %p194 = scmp.ne.s32.totalorder %s185, %s186
      %p195 = scmp.eq.s32.totalorder %s21, 0
      %p196 = por %p194, %p195
      %p197 = scmp.ne.s32.totalorder %s185, %s186
      %p198 = scmp.eq.s32.totalorder %s22, 1
      %p199 = por %p197, %p198
      %p201 = scmp.ne.s32.totalorder %s186, %s200
      %p202 = scmp.eq.s32.totalorder %s22, 0
      %p203 = por %p201, %p202
      %s204 = ssub.s32 %s23, %s35
      %s205 = ssub.s32 %s24, %s31
      %s206 = sor.u32 %s204, %s205
      %p207 = scmp.eq.s32.totalorder %s206, 0
      %s209 = sadd.s32 %s208, 1
      %s210 = scalar_select %p207, %s208, %s209
      %p213 = pneg %p207
      %p214 = scmp.eq.s32.totalorder %s16, 1
      %p215 = por %p213, %p214
      %p216 = scmp.ne.s32.totalorder %s208, %s211
      %p217 = scmp.eq.s32.totalorder %s16, 0
      %p218 = por %p216, %p217
      %p219 = scmp.ne.s32.totalorder %s208, %s211
      %p220 = scmp.eq.s32.totalorder %s21, 1
      %p221 = por %p219, %p220
      %p222 = scmp.ne.s32.totalorder %s211, %s212
      %p223 = scmp.eq.s32.totalorder %s21, 0
      %p224 = por %p222, %p223
      %p225 = scmp.ne.s32.totalorder %s211, %s212
      %p226 = scmp.eq.s32.totalorder %s22, 1
      %p227 = por %p225, %p226
      %p229 = scmp.ne.s32.totalorder %s212, %s228
      %p230 = scmp.eq.s32.totalorder %s22, 0
      %p231 = por %p229, %p230
      %p232 = scmp.le.s32.totalorder 1, %s16
      %p233 = scmp.lt.s32.totalorder %s16, 3
      %p234 = pnand %p232, %p233
      %p235 = pneg %p234
      // Predicated region
      $region9: #{tpu_custom_call.1} parent=5 // pred_check
        _
      $region10: #{tpu_custom_call.1} parent=5 // pred_check_branch
        %237 = sbr.rel (%p234) target = $region12
      $region11: #{tpu_custom_call.1} parent=5 // pred_region
        %s238 = ssub.s32 %s16, 1
        // Predicated region
        $region13: #{tpu_custom_call.1} parent=11 // pred_check
          %p239 = pneg %p133
        $region14: #{tpu_custom_call.1} parent=11 // pred_check_branch
          %241 = sbr.rel (%p239) target = $region16
        $region15: #{tpu_custom_call.1} parent=11 // pred_region
          _
        $region16: #{tpu_custom_call.1} parent=11 // pred_fallthru
          _
        // Predicated region
        $region17: #{tpu_custom_call.1} parent=11 // pred_check
          %p242 = pneg %p154
        $region18: #{tpu_custom_call.1} parent=11 // pred_check_branch
          %244 = sbr.rel (%p242) target = $region20
        $region19: #{tpu_custom_call.1} parent=11 // pred_region
          _
        $region20: #{tpu_custom_call.1} parent=11 // pred_fallthru
          _
        // Predicated region
        $region21: #{tpu_custom_call.1} parent=11 // pred_check
          %p245 = pneg %p175
        $region22: #{tpu_custom_call.1} parent=11 // pred_check_branch
          %247 = sbr.rel (%p245) target = $region24
        $region23: #{tpu_custom_call.1} parent=11 // pred_region
          _
        $region24: #{tpu_custom_call.1} parent=11 // pred_fallthru
          _
        // Predicated region
        $region25: #{tpu_custom_call.1} parent=11 // pred_check
          %p248 = pneg %p196
        $region26: #{tpu_custom_call.1} parent=11 // pred_check_branch
          %250 = sbr.rel (%p248) target = $region28
        $region27: #{tpu_custom_call.1} parent=11 // pred_region
          _
        $region28: #{tpu_custom_call.1} parent=11 // pred_fallthru
          _
      $region12: #{tpu_custom_call.1} parent=5 // pred_fallthru
        _
      %p251 = scmp.lt.s32.totalorder %s16, 2
      // Predicated region
      $region29: #{tpu_custom_call.1} parent=5 // pred_check
        %p252 = pneg %p251
      $region30: #{tpu_custom_call.1} parent=5 // pred_check_branch
        %254 = sbr.rel (%p252) target = $region32
      $region31: #{tpu_custom_call.1} parent=5 // pred_region
        // Predicated region
        $region33: #{tpu_custom_call.1} parent=31 // pred_check
          %p255 = pneg %p50
        $region34: #{tpu_custom_call.1} parent=31 // pred_check_branch
          %257 = sbr.rel (%p255) target = $region36
        $region35: #{tpu_custom_call.1} parent=31 // pred_region
          %s258 = smul.u32 2, %s24
          %p259 = scmp.lt.s32.totalorder %s23, 1
          %s260 = scalar_select %p259, %s23, 1
          %p261 = scmp.lt.s32.totalorder %s258, 1
          %s262 = scalar_select %p261, %s258, 1
          %s263 = smul.addr %s260, 2
          %s264 = sadd.s32 %s262, %s263
          %s265 = smul.addr %s264, 4
          %s266 = scalar_lea.vmem %s0, %s265
          %s267 = smul.u32 2, %s24
        $region36: #{tpu_custom_call.1} parent=31 // pred_fallthru
          _
        // Predicated region
        $region37: #{tpu_custom_call.1} parent=31 // pred_check
          %p268 = pneg %p78
        $region38: #{tpu_custom_call.1} parent=31 // pred_check_branch
          %270 = sbr.rel (%p268) target = $region40
        $region39: #{tpu_custom_call.1} parent=31 // pred_region
          %s271 = smul.u32 2, %s24
          %p272 = scmp.lt.s32.totalorder %s23, 1
          %s273 = scalar_select %p272, %s23, 1
          %p274 = scmp.lt.s32.totalorder %s271, 1
          %s275 = scalar_select %p274, %s271, 1
          %s276 = smul.addr %s273, 2
          %s277 = sadd.s32 %s275, %s276
          %s278 = smul.addr %s277, 4
          %s279 = scalar_lea.vmem %s1, %s278
          %s280 = smul.u32 2, %s24
        $region40: #{tpu_custom_call.1} parent=31 // pred_fallthru
          _
        // Predicated region
        $region41: #{tpu_custom_call.1} parent=31 // pred_check
          %p281 = pneg %p106
        $region42: #{tpu_custom_call.1} parent=31 // pred_check_branch
          %283 = sbr.rel (%p281) target = $region44
        $region43: #{tpu_custom_call.1} parent=31 // pred_region
          %s284 = smul.u32 2, %s24
          %p285 = scmp.lt.s32.totalorder %s23, 1
          %s286 = scalar_select %p285, %s23, 1
          %p287 = scmp.lt.s32.totalorder %s284, 1
          %s288 = scalar_select %p287, %s284, 1
          %s289 = smul.addr %s286, 2
          %s290 = sadd.s32 %s288, %s289
          %s291 = smul.addr %s290, 4
          %s292 = scalar_lea.vmem %s2, %s291
          %s293 = smul.u32 2, %s24
        $region44: #{tpu_custom_call.1} parent=31 // pred_fallthru
          _
      $region32: #{tpu_custom_call.1} parent=5 // pred_fallthru
        _
      %p294 = scmp.le.s32.totalorder 1, %s16
      %p295 = scmp.lt.s32.totalorder %s16, 3
      %p296 = pnand %p294, %p295
      %p297 = pneg %p296
      // Predicated region
      $region45: #{tpu_custom_call.1} parent=5 // pred_check
        _
      $region46: #{tpu_custom_call.1} parent=5 // pred_check_branch
        %299 = sbr.rel (%p296) target = $region48
      $region47: #{tpu_custom_call.1} parent=5 // pred_region
        %s300 = ssub.s32 %s16, 1
        %s301 = smul.u32 2, %s26
        %p302 = scmp.lt.s32.totalorder %s25, 1
        %s303 = scalar_select %p302, %s25, 1
        %p304 = scmp.lt.s32.totalorder %s301, 1
        %s305 = scalar_select %p304, %s301, 1
        %s306 = smul.addr %s303, 2
        %s307 = sadd.s32 %s305, %s306
        %s308 = smul.addr %s307, 4
        %s309 = scalar_lea.vmem %s0, %s308
        %p310 = pneg %p56
        %p311 = pneg %p53
        %s312 = smul.u32 2, %s26
        %p313 = scmp.lt.s32.totalorder %s25, 1
        %s314 = scalar_select %p313, %s25, 1
        %p315 = scmp.lt.s32.totalorder %s312, 1
        %s316 = scalar_select %p315, %s312, 1
        %s317 = smul.addr %s314, 2
        %s318 = sadd.s32 %s316, %s317
        %s319 = smul.addr %s318, 4
        %s320 = scalar_lea.vmem %s1, %s319
        %p321 = pneg %p84
        %p322 = pneg %p81
        %s323 = smul.u32 2, %s26
        %p324 = scmp.lt.s32.totalorder %s25, 1
        %s325 = scalar_select %p324, %s25, 1
        %p326 = scmp.lt.s32.totalorder %s323, 1
        %s327 = scalar_select %p326, %s323, 1
        %s328 = smul.addr %s325, 2
        %s329 = sadd.s32 %s327, %s328
        %s330 = smul.addr %s329, 4
        %s331 = scalar_lea.vmem %s2, %s330
        %p332 = pneg %p112
        %p333 = pneg %p109
        %p334 = pneg %p133
        %p335 = pneg %p130
        %p336 = pneg %p154
        %p337 = pneg %p151
        %p338 = pneg %p175
        %p339 = pneg %p172
        %p340 = pneg %p196
        %p341 = pneg %p193
        %p342 = pneg %p224
        %p343 = pneg %p221
        %s344 = sand.u32 %s211, 1
        %s345 = scalar_lea.sflag [#allocation3], %s344
        %s346 = sand.u32 %s211, 1
        %s347 = smul.addr %s346, 8
        %s348 = scalar_lea.vmem [#allocation2], %s347
        %s349 = smul.u32 2, %s26
        %p350 = scmp.lt.s32.totalorder %s25, 1
        %s351 = scalar_select %p350, %s25, 1
        %p352 = scmp.lt.s32.totalorder %s349, 1
        %s353 = scalar_select %p352, %s349, 1
        %s354 = smul.addr %s351, 2
        %s355 = sadd.s32 %s353, %s354
        %s356 = smul.addr %s355, 4
        %s357 = scalar_lea.vmem %s0, %s356
        %s358 = smul.u32 2, %s26
        %s359 = smul.u32 2, %s26
        %p360 = scmp.lt.s32.totalorder %s25, 1
        %s361 = scalar_select %p360, %s25, 1
        %p362 = scmp.lt.s32.totalorder %s359, 1
        %s363 = scalar_select %p362, %s359, 1
        %s364 = smul.addr %s361, 2
        %s365 = sadd.s32 %s363, %s364
        %s366 = smul.addr %s365, 4
        %s367 = scalar_lea.vmem %s1, %s366
        %s368 = smul.u32 2, %s26
        %s369 = smul.u32 2, %s26
        %p370 = scmp.lt.s32.totalorder %s25, 1
        %s371 = scalar_select %p370, %s25, 1
        %p372 = scmp.lt.s32.totalorder %s369, 1
        %s373 = scalar_select %p372, %s369, 1
        %s374 = smul.addr %s371, 2
        %s375 = sadd.s32 %s373, %s374
        %s376 = smul.addr %s375, 4
        %s377 = scalar_lea.vmem %s2, %s376
        %s378 = smul.u32 2, %s26
        %s379 = smul.u32 2, %s26
        %v380 = vld [vmem:[%s357] sm:$0xff]
        %v381 = vld [vmem:[%s3] sm:$0xf]
        %v382 = vld [vmem:[%s4] sm:$0xf]
        %384 = vset.pattern.permute.xlu0 0
        %385 = vperm.xlu0 %384, %v382
        %v386 = vpop.permute.xlu0 %385
        %v389 = vcombine.high %v380, %v380
        %vm390 = vcmask 31744
        %v392 = vsel %vm390, %v381, 0
        %vm394 = vcmask 1043456
        %v395 = vsel %vm394, %v380, 0
        %v397 = vsel %vm394, %v389, 0
        %399 = vmatprep.subr.mxu0 %v397
        %400 = vmatpush1.msra.mxu0 %v395
        %401 = vmatprep.subr.mxu0 0.0
        %402 = vmatpush1.msra.mxu0 0.0
        %403 = vmatprep.subr.mxu0 0.0
        %404 = vmatpush1.msra.mxu0 0.0
        %405 = vmatprep.subr.mxu0 0.0
        %406 = vmatpush1.msra.mxu0 0.0
        %407 = vmatprep.subr.mxu0 0.0
        %408 = vmatpush1.msra.mxu0 0.0
        %409 = vmatprep.subr.mxu0 0.0
        %410 = vmatpush1.msra.mxu0 0.0
        %411 = vmatprep.subr.mxu0 0.0
        %412 = vmatpush1.msra.mxu0 0.0
        %413 = vmatprep.subr.mxu0 0.0
        %414 = vmatpush1.msra.mxu0 0.0
        %415 = vmatprep.subr.mxu0 0.0
        %416 = vmatpush1.msra.mxu0 0.0
        %417 = vmatprep.subr.mxu0 0.0
        %418 = vmatpush1.msra.mxu0 0.0
        %419 = vmatprep.subr.mxu0 0.0
        %420 = vmatpush1.msra.mxu0 0.0
        %421 = vmatprep.subr.mxu0 0.0
        %422 = vmatpush1.msra.mxu0 0.0
        %423 = vmatprep.subr.mxu0 0.0
        %424 = vmatpush1.msra.mxu0 0.0
        %425 = vmatprep.subr.mxu0 0.0
        %426 = vmatpush1.msra.mxu0 0.0
        %427 = vmatprep.subr.mxu0 0.0
        %428 = vmatpush1.msra.mxu0 0.0
        %429 = vmatprep.subr.mxu0 0.0
        %430 = vmatpush1.msra.mxu0 0.0
        %431 = vmatprep.subr.mxu0 0.0
        %432 = vmatpush1.msra.mxu0 0.0
        %433 = vmatprep.subr.mxu0 0.0
        %434 = vmatpush1.msra.mxu0 0.0
        %435 = vmatprep.subr.mxu0 0.0
        %436 = vmatpush1.msra.mxu0 0.0
        %437 = vmatprep.subr.mxu0 0.0
        %438 = vmatpush1.msra.mxu0 0.0
        %439 = vmatprep.subr.mxu0 0.0
        %440 = vmatpush1.msra.mxu0 0.0
        %441 = vmatprep.subr.mxu0 0.0
        %442 = vmatpush1.msra.mxu0 0.0
        %443 = vmatprep.subr.mxu0 0.0
        %444 = vmatpush1.msra.mxu0 0.0
        %445 = vmatprep.subr.mxu0 0.0
        %446 = vmatpush1.msra.mxu0 0.0
        %447 = vmatprep.subr.mxu0 0.0
        %448 = vmatpush1.msra.mxu0 0.0
        %449 = vmatprep.subr.mxu0 0.0
        %450 = vmatpush1.msra.mxu0 0.0
        %451 = vmatprep.subr.mxu0 0.0
        %452 = vmatpush1.msra.mxu0 0.0
        %453 = vmatprep.subr.mxu0 0.0
        %454 = vmatpush1.msra.mxu0 0.0
        %455 = vmatprep.subr.mxu0 0.0
        %456 = vmatpush1.msra.mxu0 0.0
        %457 = vmatprep.subr.mxu0 0.0
        %458 = vmatpush1.msra.mxu0 0.0
        %459 = vmatprep.subr.mxu0 0.0
        %460 = vmatpush1.msra.mxu0 0.0
        %461 = vmatprep.subr.mxu0 0.0
        %462 = vmatpush1.msra.mxu0 0.0
        %463 = vmatprep.mubr.f32.mxu0 0.0
        %464 = vmatmul.mubr.f32.gmra.mrb[0].mxu0 %v392
        %v465 = vpop.f32.mrb[0].mxu0
        %v466 = vadd.f32 %v386, %v465
        %v467 = vpop.f32.mrb[0].mxu0
        %v468 = vadd.f32 %v386, %v467
        %469 = vdwg.mxu0
        %s470 = scalar_lea.vmem %s3, 4
        %v471 = vld [vmem:[%s470] sm:$0xf]
        %v472 = vld [vmem:[%s367] sm:$0xff]
        %s473 = scalar_lea.vmem %s4, 4
        %v474 = vld [vmem:[%s473] sm:$0xf]
        %476 = vset.pattern.permute.xlu0 0
        %477 = vperm.xlu0 %476, %v474
        %v478 = vpop.permute.xlu0 %477
        %v481 = vcombine.high %v472, %v472
        %v483 = vsel %vm390, %v471, 0
        %v485 = vsel %vm394, %v472, 0
        %v487 = vsel %vm394, %v481, 0
        %489 = vmatprep.subr.mxu0 %v487
        %490 = vmatpush1.msra.mxu0 %v485
        %491 = vmatprep.subr.mxu0 0.0
        %492 = vmatpush1.msra.mxu0 0.0
        %493 = vmatprep.subr.mxu0 0.0
        %494 = vmatpush1.msra.mxu0 0.0
        %495 = vmatprep.subr.mxu0 0.0
        %496 = vmatpush1.msra.mxu0 0.0
        %497 = vmatprep.subr.mxu0 0.0
        %498 = vmatpush1.msra.mxu0 0.0
        %499 = vmatprep.subr.mxu0 0.0
        %500 = vmatpush1.msra.mxu0 0.0
        %501 = vmatprep.subr.mxu0 0.0
        %502 = vmatpush1.msra.mxu0 0.0
        %503 = vmatprep.subr.mxu0 0.0
        %504 = vmatpush1.msra.mxu0 0.0
        %505 = vmatprep.subr.mxu0 0.0
        %506 = vmatpush1.msra.mxu0 0.0
        %507 = vmatprep.subr.mxu0 0.0
        %508 = vmatpush1.msra.mxu0 0.0
        %509 = vmatprep.subr.mxu0 0.0
        %510 = vmatpush1.msra.mxu0 0.0
        %511 = vmatprep.subr.mxu0 0.0
        %512 = vmatpush1.msra.mxu0 0.0
        %513 = vmatprep.subr.mxu0 0.0
        %514 = vmatpush1.msra.mxu0 0.0
        %515 = vmatprep.subr.mxu0 0.0
        %516 = vmatpush1.msra.mxu0 0.0
        %517 = vmatprep.subr.mxu0 0.0
        %518 = vmatpush1.msra.mxu0 0.0
        %519 = vmatprep.subr.mxu0 0.0
        %520 = vmatpush1.msra.mxu0 0.0
        %521 = vmatprep.subr.mxu0 0.0
        %522 = vmatpush1.msra.mxu0 0.0
        %523 = vmatprep.subr.mxu0 0.0
        %524 = vmatpush1.msra.mxu0 0.0
        %525 = vmatprep.subr.mxu0 0.0
        %526 = vmatpush1.msra.mxu0 0.0
        %527 = vmatprep.subr.mxu0 0.0
        %528 = vmatpush1.msra.mxu0 0.0
        %529 = vmatprep.subr.mxu0 0.0
        %530 = vmatpush1.msra.mxu0 0.0
        %531 = vmatprep.subr.mxu0 0.0
        %532 = vmatpush1.msra.mxu0 0.0
        %533 = vmatprep.subr.mxu0 0.0
        %534 = vmatpush1.msra.mxu0 0.0
        %535 = vmatprep.subr.mxu0 0.0
        %536 = vmatpush1.msra.mxu0 0.0
        %537 = vmatprep.subr.mxu0 0.0
        %538 = vmatpush1.msra.mxu0 0.0
        %539 = vmatprep.subr.mxu0 0.0
        %540 = vmatpush1.msra.mxu0 0.0
        %541 = vmatprep.subr.mxu0 0.0
        %542 = vmatpush1.msra.mxu0 0.0
        %543 = vmatprep.subr.mxu0 0.0
        %544 = vmatpush1.msra.mxu0 0.0
        %545 = vmatprep.subr.mxu0 0.0
        %546 = vmatpush1.msra.mxu0 0.0
        %547 = vmatprep.subr.mxu0 0.0
        %548 = vmatpush1.msra.mxu0 0.0
        %549 = vmatprep.subr.mxu0 0.0
        %550 = vmatpush1.msra.mxu0 0.0
        %551 = vmatprep.subr.mxu0 0.0
        %552 = vmatpush1.msra.mxu0 0.0
        %553 = vmatprep.mubr.f32.mxu0 0.0
        %554 = vmatmul.mubr.f32.gmra.mrb[0].mxu0 %v483
        %v555 = vpop.f32.mrb[0].mxu0
        %v556 = vadd.f32 %v478, %v555
        %v557 = vpop.f32.mrb[0].mxu0
        %v558 = vadd.f32 %v478, %v557
        %559 = vdwg.mxu0
        %s560 = scalar_lea.vmem %s3, 8
        %v561 = vld [vmem:[%s560] sm:$0xf]
        %v562 = vld [vmem:[%s377] sm:$0xff]
        %s563 = scalar_lea.vmem %s4, 8
        %v564 = vld [vmem:[%s563] sm:$0xf]
        %566 = vset.pattern.permute.xlu0 0
        %567 = vperm.xlu0 %566, %v564
        %v568 = vpop.permute.xlu0 %567
        %v571 = vcombine.high %v562, %v562
        %v573 = vsel %vm390, %v561, 0
        %v575 = vsel %vm394, %v562, 0
        %v577 = vsel %vm394, %v571, 0
        %579 = vmatprep.subr.mxu0 %v577
        %580 = vmatpush1.msra.mxu0 %v575
        %581 = vmatprep.subr.mxu0 0.0
        %582 = vmatpush1.msra.mxu0 0.0
        %583 = vmatprep.subr.mxu0 0.0
        %584 = vmatpush1.msra.mxu0 0.0
        %585 = vmatprep.subr.mxu0 0.0
        %586 = vmatpush1.msra.mxu0 0.0
        %587 = vmatprep.subr.mxu0 0.0
        %588 = vmatpush1.msra.mxu0 0.0
        %589 = vmatprep.subr.mxu0 0.0
        %590 = vmatpush1.msra.mxu0 0.0
        %591 = vmatprep.subr.mxu0 0.0
        %592 = vmatpush1.msra.mxu0 0.0
        %593 = vmatprep.subr.mxu0 0.0
        %594 = vmatpush1.msra.mxu0 0.0
        %595 = vmatprep.subr.mxu0 0.0
        %596 = vmatpush1.msra.mxu0 0.0
        %597 = vmatprep.subr.mxu0 0.0
        %598 = vmatpush1.msra.mxu0 0.0
        %599 = vmatprep.subr.mxu0 0.0
        %600 = vmatpush1.msra.mxu0 0.0
        %601 = vmatprep.subr.mxu0 0.0
        %602 = vmatpush1.msra.mxu0 0.0
        %603 = vmatprep.subr.mxu0 0.0
        %604 = vmatpush1.msra.mxu0 0.0
        %605 = vmatprep.subr.mxu0 0.0
        %606 = vmatpush1.msra.mxu0 0.0
        %607 = vmatprep.subr.mxu0 0.0
        %608 = vmatpush1.msra.mxu0 0.0
        %609 = vmatprep.subr.mxu0 0.0
        %610 = vmatpush1.msra.mxu0 0.0
        %611 = vmatprep.subr.mxu0 0.0
        %612 = vmatpush1.msra.mxu0 0.0
        %613 = vmatprep.subr.mxu0 0.0
        %614 = vmatpush1.msra.mxu0 0.0
        %615 = vmatprep.subr.mxu0 0.0
        %616 = vmatpush1.msra.mxu0 0.0
        %617 = vmatprep.subr.mxu0 0.0
        %618 = vmatpush1.msra.mxu0 0.0
        %619 = vmatprep.subr.mxu0 0.0
        %620 = vmatpush1.msra.mxu0 0.0
        %621 = vmatprep.subr.mxu0 0.0
        %622 = vmatpush1.msra.mxu0 0.0
        %623 = vmatprep.subr.mxu0 0.0
        %624 = vmatpush1.msra.mxu0 0.0
        %625 = vmatprep.subr.mxu0 0.0
        %626 = vmatpush1.msra.mxu0 0.0
        %627 = vmatprep.subr.mxu0 0.0
        %628 = vmatpush1.msra.mxu0 0.0
        %629 = vmatprep.subr.mxu0 0.0
        %630 = vmatpush1.msra.mxu0 0.0
        %631 = vmatprep.subr.mxu0 0.0
        %632 = vmatpush1.msra.mxu0 0.0
        %633 = vmatprep.subr.mxu0 0.0
        %634 = vmatpush1.msra.mxu0 0.0
        %635 = vmatprep.subr.mxu0 0.0
        %636 = vmatpush1.msra.mxu0 0.0
        %637 = vmatprep.subr.mxu0 0.0
        %638 = vmatpush1.msra.mxu0 0.0
        %639 = vmatprep.subr.mxu0 0.0
        %640 = vmatpush1.msra.mxu0 0.0
        %641 = vmatprep.subr.mxu0 0.0
        %642 = vmatpush1.msra.mxu0 0.0
        %643 = vmatprep.mubr.f32.mxu0 0.0
        %644 = vmatmul.mubr.f32.gmra.mrb[0].mxu0 %v573
        %v645 = vpop.f32.mrb[0].mxu0
        %v646 = vadd.f32 %v568, %v645
        %v647 = vpop.f32.mrb[0].mxu0
        %v648 = vadd.f32 %v568, %v647
        %649 = vdwg.mxu0
        %650 = vxpose.xlu0.b32.start [1/16] %v466, 128
        %651 = vxpose.xlu0.b32.cont [2/16] 0.0, 128
        %652 = vxpose.xlu0.b32.cont [3/16] 0.0, 128
        %653 = vxpose.xlu0.b32.cont [4/16] 0.0, 128
        %654 = vxpose.xlu0.b32.cont [5/16] 0.0, 128
        %655 = vxpose.xlu0.b32.cont [6/16] 0.0, 128
        %656 = vxpose.xlu0.b32.cont [7/16] 0.0, 128
        %657 = vxpose.xlu0.b32.cont [8/16] 0.0, 128
        %658 = vxpose.xlu0.b32.cont [9/16] 0.0, 128
        %659 = vxpose.xlu0.b32.cont [10/16] 0.0, 128
        %660 = vxpose.xlu0.b32.cont [11/16] 0.0, 128
        %661 = vxpose.xlu0.b32.cont [12/16] 0.0, 128
        %662 = vxpose.xlu0.b32.cont [13/16] 0.0, 128
        %663 = vxpose.xlu0.b32.cont [14/16] 0.0, 128
        %664 = vxpose.xlu0.b32.cont [15/16] 0.0, 128
        %665 = vxpose.xlu0.b32.end [16/16] 0.0, 128
        %v666 = vpop.trf.xlu0
        %v667 = vpop.trf.xlu0
        %v668 = vpop.trf.xlu0
        %v669 = vpop.trf.xlu0
        %v670 = vpop.trf.xlu0
        %v671 = vpop.trf.xlu0
        %v672 = vpop.trf.xlu0
        %v673 = vpop.trf.xlu0
        %v674 = vpop.trf.xlu0
        %v675 = vpop.trf.xlu0
        %v676 = vpop.trf.xlu0
        %v677 = vpop.trf.xlu0
        %v678 = vpop.trf.xlu0
        %v679 = vpop.trf.xlu0
        %v680 = vpop.trf.xlu0
        %v681 = vpop.trf.xlu0
        %682 = vxpose.xlu0.b32.start [1/16] %v468, 128
        %683 = vxpose.xlu0.b32.cont [2/16] 0.0, 128
        %684 = vxpose.xlu0.b32.cont [3/16] 0.0, 128
        %685 = vxpose.xlu0.b32.cont [4/16] 0.0, 128
        %686 = vxpose.xlu0.b32.cont [5/16] 0.0, 128
        %687 = vxpose.xlu0.b32.cont [6/16] 0.0, 128
        %688 = vxpose.xlu0.b32.cont [7/16] 0.0, 128
        %689 = vxpose.xlu0.b32.cont [8/16] 0.0, 128
        %690 = vxpose.xlu0.b32.cont [9/16] 0.0, 128
        %691 = vxpose.xlu0.b32.cont [10/16] 0.0, 128
        %692 = vxpose.xlu0.b32.cont [11/16] 0.0, 128
        %693 = vxpose.xlu0.b32.cont [12/16] 0.0, 128
        %694 = vxpose.xlu0.b32.cont [13/16] 0.0, 128
        %695 = vxpose.xlu0.b32.cont [14/16] 0.0, 128
        %696 = vxpose.xlu0.b32.cont [15/16] 0.0, 128
        %697 = vxpose.xlu0.b32.end [16/16] 0.0, 128
        %v698 = vpop.trf.xlu0
        %v699 = vpop.trf.xlu0
        %v700 = vpop.trf.xlu0
        %v701 = vpop.trf.xlu0
        %v702 = vpop.trf.xlu0
        %v703 = vpop.trf.xlu0
        %v704 = vpop.trf.xlu0
        %v705 = vpop.trf.xlu0
        %v706 = vpop.trf.xlu0
        %v707 = vpop.trf.xlu0
        %v708 = vpop.trf.xlu0
        %v709 = vpop.trf.xlu0
        %v710 = vpop.trf.xlu0
        %v711 = vpop.trf.xlu0
        %v712 = vpop.trf.xlu0
        %v713 = vpop.trf.xlu0
        %v715 = vsel %vm390, %v666, 0
        %v718 = vsel %vm390, %v667, 0
        %v721 = vsel %vm390, %v668, 0
        %v724 = vsel %vm390, %v669, 0
        %v727 = vsel %vm390, %v670, 0
        %v730 = vsel %vm390, %v671, 0
        %v733 = vsel %vm390, %v672, 0
        %v736 = vsel %vm390, %v673, 0
        %v739 = vsel %vm390, %v674, 0
        %v742 = vsel %vm390, %v675, 0
        %v745 = vsel %vm390, %v676, 0
        %v748 = vsel %vm390, %v677, 0
        %v751 = vsel %vm390, %v678, 0
        %v754 = vsel %vm390, %v679, 0
        %v757 = vsel %vm390, %v680, 0
        %v760 = vsel %vm390, %v681, 0
        %v763 = vsel %vm390, %v698, 0
        %v766 = vsel %vm390, %v699, 0
        %v769 = vsel %vm390, %v700, 0
        %v772 = vsel %vm390, %v701, 0
        %v775 = vsel %vm390, %v702, 0
        %v778 = vsel %vm390, %v703, 0
        %v781 = vsel %vm390, %v704, 0
        %v784 = vsel %vm390, %v705, 0
        %v787 = vsel %vm390, %v706, 0
        %v790 = vsel %vm390, %v707, 0
        %v793 = vsel %vm390, %v708, 0
        %v796 = vsel %vm390, %v709, 0
        %v799 = vsel %vm390, %v710, 0
        %v802 = vsel %vm390, %v711, 0
        %v805 = vsel %vm390, %v712, 0
        %v808 = vsel %vm390, %v713, 0
        %v811 = vsel %vm394, %v556, 0
        %v814 = vsel %vm394, %v558, 0
        %816 = vmatprep.subr.mxu0 %v814
        %817 = vmatpush1.msra.mxu0 %v811
        %818 = vmatprep.subr.mxu0 0.0
        %819 = vmatpush1.msra.mxu0 0.0
        %820 = vmatprep.subr.mxu0 0.0
        %821 = vmatpush1.msra.mxu0 0.0
        %822 = vmatprep.subr.mxu0 0.0
        %823 = vmatpush1.msra.mxu0 0.0
        %824 = vmatprep.subr.mxu0 0.0
        %825 = vmatpush1.msra.mxu0 0.0
        %826 = vmatprep.subr.mxu0 0.0
        %827 = vmatpush1.msra.mxu0 0.0
        %828 = vmatprep.subr.mxu0 0.0
        %829 = vmatpush1.msra.mxu0 0.0
        %830 = vmatprep.subr.mxu0 0.0
        %831 = vmatpush1.msra.mxu0 0.0
        %832 = vmatprep.subr.mxu0 0.0
        %833 = vmatpush1.msra.mxu0 0.0
        %834 = vmatprep.subr.mxu0 0.0
        %835 = vmatpush1.msra.mxu0 0.0
        %836 = vmatprep.subr.mxu0 0.0
        %837 = vmatpush1.msra.mxu0 0.0
        %838 = vmatprep.subr.mxu0 0.0
        %839 = vmatpush1.msra.mxu0 0.0
        %840 = vmatprep.subr.mxu0 0.0
        %841 = vmatpush1.msra.mxu0 0.0
        %842 = vmatprep.subr.mxu0 0.0
        %843 = vmatpush1.msra.mxu0 0.0
        %844 = vmatprep.subr.mxu0 0.0
        %845 = vmatpush1.msra.mxu0 0.0
        %846 = vmatprep.subr.mxu0 0.0
        %847 = vmatpush1.msra.mxu0 0.0
        %848 = vmatprep.subr.mxu0 0.0
        %849 = vmatpush1.msra.mxu0 0.0
        %850 = vmatprep.subr.mxu0 0.0
        %851 = vmatpush1.msra.mxu0 0.0
        %852 = vmatprep.subr.mxu0 0.0
        %853 = vmatpush1.msra.mxu0 0.0
        %854 = vmatprep.subr.mxu0 0.0
        %855 = vmatpush1.msra.mxu0 0.0
        %856 = vmatprep.subr.mxu0 0.0
        %857 = vmatpush1.msra.mxu0 0.0
        %858 = vmatprep.subr.mxu0 0.0
        %859 = vmatpush1.msra.mxu0 0.0
        %860 = vmatprep.subr.mxu0 0.0
        %861 = vmatpush1.msra.mxu0 0.0
        %862 = vmatprep.subr.mxu0 0.0
        %863 = vmatpush1.msra.mxu0 0.0
        %864 = vmatprep.subr.mxu0 0.0
        %865 = vmatpush1.msra.mxu0 0.0
        %866 = vmatprep.subr.mxu0 0.0
        %867 = vmatpush1.msra.mxu0 0.0
        %868 = vmatprep.subr.mxu0 0.0
        %869 = vmatpush1.msra.mxu0 0.0
        %870 = vmatprep.subr.mxu0 0.0
        %871 = vmatpush1.msra.mxu0 0.0
        %872 = vmatprep.subr.mxu0 0.0
        %873 = vmatpush1.msra.mxu0 0.0
        %874 = vmatprep.subr.mxu0 0.0
        %875 = vmatpush1.msra.mxu0 0.0
        %876 = vmatprep.subr.mxu0 0.0
        %877 = vmatpush1.msra.mxu0 0.0
        %878 = vmatprep.subr.mxu0 0.0
        %879 = vmatpush1.msra.mxu0 0.0
        %880 = vmatprep.mubr.f32.mxu0 0.0
        %881 = vmatmul.mubr.f32.gmra.mrb[0].mxu0 %v715
        %v882 = vpop.f32.mrb[0].mxu0
        %v883 = vadd.f32 0.0, %v882
        %v884 = vpop.f32.mrb[0].mxu0
        %v885 = vadd.f32 0.0, %v884
        %886 = vmatprep.mubr.f32.mxu0 0.0
        %887 = vmatmul.mubr.f32.gmra.mrb[0].mxu0 %v718
        %v888 = vpop.f32.mrb[0].mxu0
        %v889 = vadd.f32 0.0, %v888
        %v890 = vpop.f32.mrb[0].mxu0
        %v891 = vadd.f32 0.0, %v890
        %892 = vmatprep.mubr.f32.mxu0 0.0
        %893 = vmatmul.mubr.f32.gmra.mrb[0].mxu0 %v721
        %v894 = vpop.f32.mrb[0].mxu0
        %v895 = vadd.f32 0.0, %v894
        %v896 = vpop.f32.mrb[0].mxu0
        %v897 = vadd.f32 0.0, %v896
        %898 = vmatprep.mubr.f32.mxu0 0.0
        %899 = vmatmul.mubr.f32.gmra.mrb[0].mxu0 %v724
        %v900 = vpop.f32.mrb[0].mxu0
        %v901 = vadd.f32 0.0, %v900
        %v902 = vpop.f32.mrb[0].mxu0
        %v903 = vadd.f32 0.0, %v902
        %904 = vmatprep.mubr.f32.mxu0 0.0
        %905 = vmatmul.mubr.f32.gmra.mrb[0].mxu0 %v727
        %v906 = vpop.f32.mrb[0].mxu0
        %v907 = vadd.f32 0.0, %v906
        %v908 = vpop.f32.mrb[0].mxu0
        %v909 = vadd.f32 0.0, %v908
        %910 = vmatprep.mubr.f32.mxu0 0.0
        %911 = vmatmul.mubr.f32.gmra.mrb[0].mxu0 %v730
        %v912 = vpop.f32.mrb[0].mxu0
        %v913 = vadd.f32 0.0, %v912
        %v914 = vpop.f32.mrb[0].mxu0
        %v915 = vadd.f32 0.0, %v914
        %916 = vmatprep.mubr.f32.mxu0 0.0
        %917 = vmatmul.mubr.f32.gmra.mrb[0].mxu0 %v733
        %v918 = vpop.f32.mrb[0].mxu0
        %v919 = vadd.f32 0.0, %v918
        %v920 = vpop.f32.mrb[0].mxu0
        %v921 = vadd.f32 0.0, %v920
        %922 = vmatprep.mubr.f32.mxu0 0.0
        %923 = vmatmul.mubr.f32.gmra.mrb[0].mxu0 %v736
        %v924 = vpop.f32.mrb[0].mxu0
        %v925 = vadd.f32 0.0, %v924
        %v926 = vpop.f32.mrb[0].mxu0
        %v927 = vadd.f32 0.0, %v926
        %928 = vmatprep.mubr.f32.mxu0 0.0
        %929 = vmatmul.mubr.f32.gmra.mrb[0].mxu0 %v739
        %v930 = vpop.f32.mrb[0].mxu0
        %v931 = vadd.f32 0.0, %v930
        %v932 = vpop.f32.mrb[0].mxu0
        %v933 = vadd.f32 0.0, %v932
        %934 = vmatprep.mubr.f32.mxu0 0.0
        %935 = vmatmul.mubr.f32.gmra.mrb[0].mxu0 %v742
        %v936 = vpop.f32.mrb[0].mxu0
        %v937 = vadd.f32 0.0, %v936
        %v938 = vpop.f32.mrb[0].mxu0
        %v939 = vadd.f32 0.0, %v938
        %940 = vmatprep.mubr.f32.mxu0 0.0
        %941 = vmatmul.mubr.f32.gmra.mrb[0].mxu0 %v745
        %v942 = vpop.f32.mrb[0].mxu0
        %v943 = vadd.f32 0.0, %v942
        %v944 = vpop.f32.mrb[0].mxu0
        %v945 = vadd.f32 0.0, %v944
        %946 = vmatprep.mubr.f32.mxu0 0.0
        %947 = vmatmul.mubr.f32.gmra.mrb[0].mxu0 %v748
        %v948 = vpop.f32.mrb[0].mxu0
        %v949 = vadd.f32 0.0, %v948
        %v950 = vpop.f32.mrb[0].mxu0
        %v951 = vadd.f32 0.0, %v950
        %952 = vmatprep.mubr.f32.mxu0 0.0
        %953 = vmatmul.mubr.f32.gmra.mrb[0].mxu0 %v751
        %v954 = vpop.f32.mrb[0].mxu0
        %v955 = vadd.f32 0.0, %v954
        %v956 = vpop.f32.mrb[0].mxu0
        %v957 = vadd.f32 0.0, %v956
        %958 = vmatprep.mubr.f32.mxu0 0.0
        %959 = vmatmul.mubr.f32.gmra.mrb[0].mxu0 %v754
        %v960 = vpop.f32.mrb[0].mxu0
        %v961 = vadd.f32 0.0, %v960
        %v962 = vpop.f32.mrb[0].mxu0
        %v963 = vadd.f32 0.0, %v962
        %964 = vmatprep.mubr.f32.mxu0 0.0
        %965 = vmatmul.mubr.f32.gmra.mrb[0].mxu0 %v757
        %v966 = vpop.f32.mrb[0].mxu0
        %v967 = vadd.f32 0.0, %v966
        %v968 = vpop.f32.mrb[0].mxu0
        %v969 = vadd.f32 0.0, %v968
        %970 = vmatprep.mubr.f32.mxu0 0.0
        %971 = vmatmul.mubr.f32.gmra.mrb[0].mxu0 %v760
        %v972 = vpop.f32.mrb[0].mxu0
        %v973 = vadd.f32 0.0, %v972
        %v974 = vpop.f32.mrb[0].mxu0
        %v975 = vadd.f32 0.0, %v974
        %976 = vmatprep.mubr.f32.mxu0 0.0
        %977 = vmatmul.mubr.f32.gmra.mrb[0].mxu0 %v763
        %v978 = vpop.f32.mrb[0].mxu0
        %v979 = vadd.f32 0.0, %v978
        %v980 = vpop.f32.mrb[0].mxu0
        %v981 = vadd.f32 0.0, %v980
        %982 = vmatprep.mubr.f32.mxu0 0.0
        %983 = vmatmul.mubr.f32.gmra.mrb[0].mxu0 %v766
        %v984 = vpop.f32.mrb[0].mxu0
        %v985 = vadd.f32 0.0, %v984
        %v986 = vpop.f32.mrb[0].mxu0
        %v987 = vadd.f32 0.0, %v986
        %988 = vmatprep.mubr.f32.mxu0 0.0
        %989 = vmatmul.mubr.f32.gmra.mrb[0].mxu0 %v769
        %v990 = vpop.f32.mrb[0].mxu0
        %v991 = vadd.f32 0.0, %v990
        %v992 = vpop.f32.mrb[0].mxu0
        %v993 = vadd.f32 0.0, %v992
        %994 = vmatprep.mubr.f32.mxu0 0.0
        %995 = vmatmul.mubr.f32.gmra.mrb[0].mxu0 %v772
        %v996 = vpop.f32.mrb[0].mxu0
        %v997 = vadd.f32 0.0, %v996
        %v998 = vpop.f32.mrb[0].mxu0
        %v999 = vadd.f32 0.0, %v998
        %1000 = vmatprep.mubr.f32.mxu0 0.0
        %1001 = vmatmul.mubr.f32.gmra.mrb[0].mxu0 %v775
        %v1002 = vpop.f32.mrb[0].mxu0
        %v1003 = vadd.f32 0.0, %v1002
        %v1004 = vpop.f32.mrb[0].mxu0
        %v1005 = vadd.f32 0.0, %v1004
        %1006 = vmatprep.mubr.f32.mxu0 0.0
        %1007 = vmatmul.mubr.f32.gmra.mrb[0].mxu0 %v778
        %v1008 = vpop.f32.mrb[0].mxu0
        %v1009 = vadd.f32 0.0, %v1008
        %v1010 = vpop.f32.mrb[0].mxu0
        %v1011 = vadd.f32 0.0, %v1010
        %1012 = vmatprep.mubr.f32.mxu0 0.0
        %1013 = vmatmul.mubr.f32.gmra.mrb[0].mxu0 %v781
        %v1014 = vpop.f32.mrb[0].mxu0
        %v1015 = vadd.f32 0.0, %v1014
        %v1016 = vpop.f32.mrb[0].mxu0
        %v1017 = vadd.f32 0.0, %v1016
        %1018 = vmatprep.mubr.f32.mxu0 0.0
        %1019 = vmatmul.mubr.f32.gmra.mrb[0].mxu0 %v784
        %v1020 = vpop.f32.mrb[0].mxu0
        %v1021 = vadd.f32 0.0, %v1020
        %v1022 = vpop.f32.mrb[0].mxu0
        %v1023 = vadd.f32 0.0, %v1022
        %1024 = vmatprep.mubr.f32.mxu0 0.0
        %1025 = vmatmul.mubr.f32.gmra.mrb[0].mxu0 %v787
        %v1026 = vpop.f32.mrb[0].mxu0
        %v1027 = vadd.f32 0.0, %v1026
        %v1028 = vpop.f32.mrb[0].mxu0
        %v1029 = vadd.f32 0.0, %v1028
        %1030 = vmatprep.mubr.f32.mxu0 0.0
        %1031 = vmatmul.mubr.f32.gmra.mrb[0].mxu0 %v790
        %v1032 = vpop.f32.mrb[0].mxu0
        %v1033 = vadd.f32 0.0, %v1032
        %v1034 = vpop.f32.mrb[0].mxu0
        %v1035 = vadd.f32 0.0, %v1034
        %1036 = vmatprep.mubr.f32.mxu0 0.0
        %1037 = vmatmul.mubr.f32.gmra.mrb[0].mxu0 %v793
        %v1038 = vpop.f32.mrb[0].mxu0
        %v1039 = vadd.f32 0.0, %v1038
        %v1040 = vpop.f32.mrb[0].mxu0
        %v1041 = vadd.f32 0.0, %v1040
        %1042 = vmatprep.mubr.f32.mxu0 0.0
        %1043 = vmatmul.mubr.f32.gmra.mrb[0].mxu0 %v796
        %v1044 = vpop.f32.mrb[0].mxu0
        %v1045 = vadd.f32 0.0, %v1044
        %v1046 = vpop.f32.mrb[0].mxu0
        %v1047 = vadd.f32 0.0, %v1046
        %1048 = vmatprep.mubr.f32.mxu0 0.0
        %1049 = vmatmul.mubr.f32.gmra.mrb[0].mxu0 %v799
        %v1050 = vpop.f32.mrb[0].mxu0
        %v1051 = vadd.f32 0.0, %v1050
        %v1052 = vpop.f32.mrb[0].mxu0
        %v1053 = vadd.f32 0.0, %v1052
        %1054 = vmatprep.mubr.f32.mxu0 0.0
        %1055 = vmatmul.mubr.f32.gmra.mrb[0].mxu0 %v802
        %v1056 = vpop.f32.mrb[0].mxu0
        %v1057 = vadd.f32 0.0, %v1056
        %v1058 = vpop.f32.mrb[0].mxu0
        %v1059 = vadd.f32 0.0, %v1058
        %1060 = vmatprep.mubr.f32.mxu0 0.0
        %1061 = vmatmul.mubr.f32.gmra.mrb[0].mxu0 %v805
        %v1062 = vpop.f32.mrb[0].mxu0
        %v1063 = vadd.f32 0.0, %v1062
        %v1064 = vpop.f32.mrb[0].mxu0
        %v1065 = vadd.f32 0.0, %v1064
        %1066 = vmatprep.mubr.f32.mxu0 0.0
        %1067 = vmatmul.mubr.f32.gmra.mrb[0].mxu0 %v808
        %v1068 = vpop.f32.mrb[0].mxu0
        %v1069 = vadd.f32 0.0, %v1068
        %v1070 = vpop.f32.mrb[0].mxu0
        %v1071 = vadd.f32 0.0, %v1070
        %1072 = vdwg.mxu0
        %v1073 = vld [vmem:[%s5] sm:$0xff]
        %v1074 = vld [vmem:[%s5 + $0x8] sm:$0xff]
        %v1075 = vld [vmem:[%s5 + $0x10] sm:$0xff]
        %v1076 = vld [vmem:[%s5 + $0x18] sm:$0xff]
        %v1077 = vld [vmem:[%s5 + $0x20] sm:$0xff]
        %v1078 = vld [vmem:[%s5 + $0x28] sm:$0xff]
        %v1079 = vld [vmem:[%s5 + $0x30] sm:$0xff]
        %v1080 = vld [vmem:[%s5 + $0x38] sm:$0xff]
        %v1081 = vld [vmem:[%s5 + $0x40] sm:$0xff]
        %v1082 = vld [vmem:[%s5 + $0x48] sm:$0xff]
        %v1083 = vld [vmem:[%s5 + $0x50] sm:$0xff]
        %v1084 = vld [vmem:[%s5 + $0x58] sm:$0xff]
        %v1085 = vld [vmem:[%s5 + $0x60] sm:$0xff]
        %v1086 = vld [vmem:[%s5 + $0x68] sm:$0xff]
        %v1087 = vld [vmem:[%s5 + $0x70] sm:$0xff]
        %v1088 = vld [vmem:[%s5 + $0x78] sm:$0xff]
        %v1089 = vld [vmem:[%s5 + $0x80] sm:$0xff]
        %v1090 = vld [vmem:[%s5 + $0x88] sm:$0xff]
        %v1091 = vld [vmem:[%s5 + $0x90] sm:$0xff]
        %v1092 = vld [vmem:[%s5 + $0x98] sm:$0xff]
        %v1093 = vld [vmem:[%s5 + $0xa0] sm:$0xff]
        %v1094 = vld [vmem:[%s5 + $0xa8] sm:$0xff]
        %v1095 = vld [vmem:[%s5 + $0xb0] sm:$0xff]
        %v1096 = vld [vmem:[%s5 + $0xb8] sm:$0xff]
        %v1097 = vld [vmem:[%s5 + $0xc0] sm:$0xff]
        %v1098 = vld [vmem:[%s5 + $0xc8] sm:$0xff]
        %v1099 = vld [vmem:[%s5 + $0xd0] sm:$0xff]
        %v1100 = vld [vmem:[%s5 + $0xd8] sm:$0xff]
        %v1101 = vld [vmem:[%s5 + $0xe0] sm:$0xff]
        %v1102 = vld [vmem:[%s5 + $0xe8] sm:$0xff]
        %v1103 = vld [vmem:[%s5 + $0xf0] sm:$0xff]
        %v1104 = vld [vmem:[%s5 + $0xf8] sm:$0xff]
        %v1105 = vld [vmem:[%s6] sm:$0x3]
        %1106 = vset.pattern.permute.xlu0 0
        %1107 = vperm.xlu0 %1106, %v1073
        %v1108 = vpop.permute.xlu0 %1107
        %1109 = vset.pattern.permute.xlu0 0
        %1110 = vperm.xlu0 %1109, %v1074
        %v1111 = vpop.permute.xlu0 %1110
        %1112 = vset.pattern.permute.xlu0 0
        %1113 = vperm.xlu0 %1112, %v1075
        %v1114 = vpop.permute.xlu0 %1113
        %1115 = vset.pattern.permute.xlu0 0
        %1116 = vperm.xlu0 %1115, %v1076
        %v1117 = vpop.permute.xlu0 %1116
        %1118 = vset.pattern.permute.xlu0 0
        %1119 = vperm.xlu0 %1118, %v1077
        %v1120 = vpop.permute.xlu0 %1119
        %1121 = vset.pattern.permute.xlu0 0
        %1122 = vperm.xlu0 %1121, %v1078
        %v1123 = vpop.permute.xlu0 %1122
        %1124 = vset.pattern.permute.xlu0 0
        %1125 = vperm.xlu0 %1124, %v1079
        %v1126 = vpop.permute.xlu0 %1125
        %1127 = vset.pattern.permute.xlu0 0
        %1128 = vperm.xlu0 %1127, %v1080
        %v1129 = vpop.permute.xlu0 %1128
        %1130 = vset.pattern.permute.xlu0 0
        %1131 = vperm.xlu0 %1130, %v1081
        %v1132 = vpop.permute.xlu0 %1131
        %1133 = vset.pattern.permute.xlu0 0
        %1134 = vperm.xlu0 %1133, %v1082
        %v1135 = vpop.permute.xlu0 %1134
        %1136 = vset.pattern.permute.xlu0 0
        %1137 = vperm.xlu0 %1136, %v1083
        %v1138 = vpop.permute.xlu0 %1137
        %1139 = vset.pattern.permute.xlu0 0
        %1140 = vperm.xlu0 %1139, %v1084
        %v1141 = vpop.permute.xlu0 %1140
        %1142 = vset.pattern.permute.xlu0 0
        %1143 = vperm.xlu0 %1142, %v1085
        %v1144 = vpop.permute.xlu0 %1143
        %1145 = vset.pattern.permute.xlu0 0
        %1146 = vperm.xlu0 %1145, %v1086
        %v1147 = vpop.permute.xlu0 %1146
        %1148 = vset.pattern.permute.xlu0 0
        %1149 = vperm.xlu0 %1148, %v1087
        %v1150 = vpop.permute.xlu0 %1149
        %1151 = vset.pattern.permute.xlu0 0
        %1152 = vperm.xlu0 %1151, %v1088
        %v1153 = vpop.permute.xlu0 %1152
        %1154 = vset.pattern.permute.xlu0 0
        %1155 = vperm.xlu0 %1154, %v1089
        %v1156 = vpop.permute.xlu0 %1155
        %1157 = vset.pattern.permute.xlu0 0
        %1158 = vperm.xlu0 %1157, %v1090
        %v1159 = vpop.permute.xlu0 %1158
        %1160 = vset.pattern.permute.xlu0 0
        %1161 = vperm.xlu0 %1160, %v1091
        %v1162 = vpop.permute.xlu0 %1161
        %1163 = vset.pattern.permute.xlu0 0
        %1164 = vperm.xlu0 %1163, %v1092
        %v1165 = vpop.permute.xlu0 %1164
        %1166 = vset.pattern.permute.xlu0 0
        %1167 = vperm.xlu0 %1166, %v1093
        %v1168 = vpop.permute.xlu0 %1167
        %1169 = vset.pattern.permute.xlu0 0
        %1170 = vperm.xlu0 %1169, %v1094
        %v1171 = vpop.permute.xlu0 %1170
        %1172 = vset.pattern.permute.xlu0 0
        %1173 = vperm.xlu0 %1172, %v1095
        %v1174 = vpop.permute.xlu0 %1173
        %1175 = vset.pattern.permute.xlu0 0
        %1176 = vperm.xlu0 %1175, %v1096
        %v1177 = vpop.permute.xlu0 %1176
        %1178 = vset.pattern.permute.xlu0 0
        %1179 = vperm.xlu0 %1178, %v1097
        %v1180 = vpop.permute.xlu0 %1179
        %1181 = vset.pattern.permute.xlu0 0
        %1182 = vperm.xlu0 %1181, %v1098
        %v1183 = vpop.permute.xlu0 %1182
        %1184 = vset.pattern.permute.xlu0 0
        %1185 = vperm.xlu0 %1184, %v1099
        %v1186 = vpop.permute.xlu0 %1185
        %1187 = vset.pattern.permute.xlu0 0
        %1188 = vperm.xlu0 %1187, %v1100
        %v1189 = vpop.permute.xlu0 %1188
        %1190 = vset.pattern.permute.xlu0 0
        %1191 = vperm.xlu0 %1190, %v1101
        %v1192 = vpop.permute.xlu0 %1191
        %1193 = vset.pattern.permute.xlu0 0
        %1194 = vperm.xlu0 %1193, %v1102
        %v1195 = vpop.permute.xlu0 %1194
        %1196 = vset.pattern.permute.xlu0 0
        %1197 = vperm.xlu0 %1196, %v1103
        %v1198 = vpop.permute.xlu0 %1197
        %1199 = vset.pattern.permute.xlu0 0
        %1200 = vperm.xlu0 %1199, %v1104
        %v1201 = vpop.permute.xlu0 %1200
        %v1202 = vlaneseq
        %v1203 = vshrl.u32 %v1202, 7
        %v1204 = vsub.s32 0, %v1203
        %v1205 = vrot.slane %v1105, %v1204
        %v1206 = vlaneseq
        %v1207 = vshrl.u32 %v1206, 7
        %v1208 = vsub.s32 1, %v1207
        %v1209 = vrot.slane %v1105, %v1208
        %vm1210 = vcmp.eq.s32.totalorder %v1108, %v1205
        %vm1211 = vcmp.eq.s32.totalorder %v1108, %v1209
        %vm1212 = vcmp.eq.s32.totalorder %v1111, %v1205
        %vm1213 = vcmp.eq.s32.totalorder %v1111, %v1209
        %vm1214 = vcmp.eq.s32.totalorder %v1114, %v1205
        %vm1215 = vcmp.eq.s32.totalorder %v1114, %v1209
        %vm1216 = vcmp.eq.s32.totalorder %v1117, %v1205
        %vm1217 = vcmp.eq.s32.totalorder %v1117, %v1209
        %vm1218 = vcmp.eq.s32.totalorder %v1120, %v1205
        %vm1219 = vcmp.eq.s32.totalorder %v1120, %v1209
        %vm1220 = vcmp.eq.s32.totalorder %v1123, %v1205
        %vm1221 = vcmp.eq.s32.totalorder %v1123, %v1209
        %vm1222 = vcmp.eq.s32.totalorder %v1126, %v1205
        %vm1223 = vcmp.eq.s32.totalorder %v1126, %v1209
        %vm1224 = vcmp.eq.s32.totalorder %v1129, %v1205
        %vm1225 = vcmp.eq.s32.totalorder %v1129, %v1209
        %vm1226 = vcmp.eq.s32.totalorder %v1132, %v1205
        %vm1227 = vcmp.eq.s32.totalorder %v1132, %v1209
        %vm1228 = vcmp.eq.s32.totalorder %v1135, %v1205
        %vm1229 = vcmp.eq.s32.totalorder %v1135, %v1209
        %vm1230 = vcmp.eq.s32.totalorder %v1138, %v1205
        %vm1231 = vcmp.eq.s32.totalorder %v1138, %v1209
        %vm1232 = vcmp.eq.s32.totalorder %v1141, %v1205
        %vm1233 = vcmp.eq.s32.totalorder %v1141, %v1209
        %vm1234 = vcmp.eq.s32.totalorder %v1144, %v1205
        %vm1235 = vcmp.eq.s32.totalorder %v1144, %v1209
        %vm1236 = vcmp.eq.s32.totalorder %v1147, %v1205
        %vm1237 = vcmp.eq.s32.totalorder %v1147, %v1209
        %vm1238 = vcmp.eq.s32.totalorder %v1150, %v1205
        %vm1239 = vcmp.eq.s32.totalorder %v1150, %v1209
        %vm1240 = vcmp.eq.s32.totalorder %v1153, %v1205
        %vm1241 = vcmp.eq.s32.totalorder %v1153, %v1209
        %vm1242 = vcmp.eq.s32.totalorder %v1156, %v1205
        %vm1243 = vcmp.eq.s32.totalorder %v1156, %v1209
        %vm1244 = vcmp.eq.s32.totalorder %v1159, %v1205
        %vm1245 = vcmp.eq.s32.totalorder %v1159, %v1209
        %vm1246 = vcmp.eq.s32.totalorder %v1162, %v1205
        %vm1247 = vcmp.eq.s32.totalorder %v1162, %v1209
        %vm1248 = vcmp.eq.s32.totalorder %v1165, %v1205
        %vm1249 = vcmp.eq.s32.totalorder %v1165, %v1209
        %vm1250 = vcmp.eq.s32.totalorder %v1168, %v1205
        %vm1251 = vcmp.eq.s32.totalorder %v1168, %v1209
        %vm1252 = vcmp.eq.s32.totalorder %v1171, %v1205
        %vm1253 = vcmp.eq.s32.totalorder %v1171, %v1209
        %vm1254 = vcmp.eq.s32.totalorder %v1174, %v1205
        %vm1255 = vcmp.eq.s32.totalorder %v1174, %v1209
        %vm1256 = vcmp.eq.s32.totalorder %v1177, %v1205
        %vm1257 = vcmp.eq.s32.totalorder %v1177, %v1209
        %vm1258 = vcmp.eq.s32.totalorder %v1180, %v1205
        %vm1259 = vcmp.eq.s32.totalorder %v1180, %v1209
        %vm1260 = vcmp.eq.s32.totalorder %v1183, %v1205
        %vm1261 = vcmp.eq.s32.totalorder %v1183, %v1209
        %vm1262 = vcmp.eq.s32.totalorder %v1186, %v1205
        %vm1263 = vcmp.eq.s32.totalorder %v1186, %v1209
        %vm1264 = vcmp.eq.s32.totalorder %v1189, %v1205
        %vm1265 = vcmp.eq.s32.totalorder %v1189, %v1209
        %vm1266 = vcmp.eq.s32.totalorder %v1192, %v1205
        %vm1267 = vcmp.eq.s32.totalorder %v1192, %v1209
        %vm1268 = vcmp.eq.s32.totalorder %v1195, %v1205
        %vm1269 = vcmp.eq.s32.totalorder %v1195, %v1209
        %vm1270 = vcmp.eq.s32.totalorder %v1198, %v1205
        %vm1271 = vcmp.eq.s32.totalorder %v1198, %v1209
        %vm1272 = vcmp.eq.s32.totalorder %v1201, %v1205
        %vm1273 = vcmp.eq.s32.totalorder %v1201, %v1209
        %v1274 = vsel %vm1210, %v883, 0.0
        %v1275 = vsel %vm1211, %v885, 0.0
        %v1276 = vsel %vm1212, %v889, 0.0
        %v1277 = vsel %vm1213, %v891, 0.0
        %v1278 = vsel %vm1214, %v895, 0.0
        %v1279 = vsel %vm1215, %v897, 0.0
        %v1280 = vsel %vm1216, %v901, 0.0
        %v1281 = vsel %vm1217, %v903, 0.0
        %v1282 = vsel %vm1218, %v907, 0.0
        %v1283 = vsel %vm1219, %v909, 0.0
        %v1284 = vsel %vm1220, %v913, 0.0
        %v1285 = vsel %vm1221, %v915, 0.0
        %v1286 = vsel %vm1222, %v919, 0.0
        %v1287 = vsel %vm1223, %v921, 0.0
        %v1288 = vsel %vm1224, %v925, 0.0
        %v1289 = vsel %vm1225, %v927, 0.0
        %v1290 = vsel %vm1226, %v931, 0.0
        %v1291 = vsel %vm1227, %v933, 0.0
        %v1292 = vsel %vm1228, %v937, 0.0
        %v1293 = vsel %vm1229, %v939, 0.0
        %v1294 = vsel %vm1230, %v943, 0.0
        %v1295 = vsel %vm1231, %v945, 0.0
        %v1296 = vsel %vm1232, %v949, 0.0
        %v1297 = vsel %vm1233, %v951, 0.0
        %v1298 = vsel %vm1234, %v955, 0.0
        %v1299 = vsel %vm1235, %v957, 0.0
        %v1300 = vsel %vm1236, %v961, 0.0
        %v1301 = vsel %vm1237, %v963, 0.0
        %v1302 = vsel %vm1238, %v967, 0.0
        %v1303 = vsel %vm1239, %v969, 0.0
        %v1304 = vsel %vm1240, %v973, 0.0
        %v1305 = vsel %vm1241, %v975, 0.0
        %v1306 = vsel %vm1242, %v979, 0.0
        %v1307 = vsel %vm1243, %v981, 0.0
        %v1308 = vsel %vm1244, %v985, 0.0
        %v1309 = vsel %vm1245, %v987, 0.0
        %v1310 = vsel %vm1246, %v991, 0.0
        %v1311 = vsel %vm1247, %v993, 0.0
        %v1312 = vsel %vm1248, %v997, 0.0
        %v1313 = vsel %vm1249, %v999, 0.0
        %v1314 = vsel %vm1250, %v1003, 0.0
        %v1315 = vsel %vm1251, %v1005, 0.0
        %v1316 = vsel %vm1252, %v1009, 0.0
        %v1317 = vsel %vm1253, %v1011, 0.0
        %v1318 = vsel %vm1254, %v1015, 0.0
        %v1319 = vsel %vm1255, %v1017, 0.0
        %v1320 = vsel %vm1256, %v1021, 0.0
        %v1321 = vsel %vm1257, %v1023, 0.0
        %v1322 = vsel %vm1258, %v1027, 0.0
        %v1323 = vsel %vm1259, %v1029, 0.0
        %v1324 = vsel %vm1260, %v1033, 0.0
        %v1325 = vsel %vm1261, %v1035, 0.0
        %v1326 = vsel %vm1262, %v1039, 0.0
        %v1327 = vsel %vm1263, %v1041, 0.0
        %v1328 = vsel %vm1264, %v1045, 0.0
        %v1329 = vsel %vm1265, %v1047, 0.0
        %v1330 = vsel %vm1266, %v1051, 0.0
        %v1331 = vsel %vm1267, %v1053, 0.0
        %v1332 = vsel %vm1268, %v1057, 0.0
        %v1333 = vsel %vm1269, %v1059, 0.0
        %v1334 = vsel %vm1270, %v1063, 0.0
        %v1335 = vsel %vm1271, %v1065, 0.0
        %v1336 = vsel %vm1272, %v1069, 0.0
        %v1337 = vsel %vm1273, %v1071, 0.0
        %1339 = vmatprep.subr.mxu0 %v1275
        %1340 = vmatpush1.xpose.msra.mxu0 %v1274
        %1341 = vmatprep.subr.mxu0 %v1277
        %1342 = vmatpush1.xpose.msra.mxu0 %v1276
        %1343 = vmatprep.subr.mxu0 %v1279
        %1344 = vmatpush1.xpose.msra.mxu0 %v1278
        %1345 = vmatprep.subr.mxu0 %v1281
        %1346 = vmatpush1.xpose.msra.mxu0 %v1280
        %1347 = vmatprep.subr.mxu0 %v1283
        %1348 = vmatpush1.xpose.msra.mxu0 %v1282
        %1349 = vmatprep.subr.mxu0 %v1285
        %1350 = vmatpush1.xpose.msra.mxu0 %v1284
        %1351 = vmatprep.subr.mxu0 %v1287
        %1352 = vmatpush1.xpose.msra.mxu0 %v1286
        %1353 = vmatprep.subr.mxu0 %v1289
        %1354 = vmatpush1.xpose.msra.mxu0 %v1288
        %1355 = vmatprep.subr.mxu0 %v1291
        %1356 = vmatpush1.xpose.msra.mxu0 %v1290
        %1357 = vmatprep.subr.mxu0 %v1293
        %1358 = vmatpush1.xpose.msra.mxu0 %v1292
        %1359 = vmatprep.subr.mxu0 %v1295
        %1360 = vmatpush1.xpose.msra.mxu0 %v1294
        %1361 = vmatprep.subr.mxu0 %v1297
        %1362 = vmatpush1.xpose.msra.mxu0 %v1296
        %1363 = vmatprep.subr.mxu0 %v1299
        %1364 = vmatpush1.xpose.msra.mxu0 %v1298
        %1365 = vmatprep.subr.mxu0 %v1301
        %1366 = vmatpush1.xpose.msra.mxu0 %v1300
        %1367 = vmatprep.subr.mxu0 %v1303
        %1368 = vmatpush1.xpose.msra.mxu0 %v1302
        %1369 = vmatprep.subr.mxu0 %v1305
        %1370 = vmatpush1.xpose.msra.mxu0 %v1304
        %1371 = vmatprep.subr.mxu0 %v1307
        %1372 = vmatpush1.xpose.msra.mxu0 %v1306
        %1373 = vmatprep.subr.mxu0 %v1309
        %1374 = vmatpush1.xpose.msra.mxu0 %v1308
        %1375 = vmatprep.subr.mxu0 %v1311
        %1376 = vmatpush1.xpose.msra.mxu0 %v1310
        %1377 = vmatprep.subr.mxu0 %v1313
        %1378 = vmatpush1.xpose.msra.mxu0 %v1312
        %1379 = vmatprep.subr.mxu0 %v1315
        %1380 = vmatpush1.xpose.msra.mxu0 %v1314
        %1381 = vmatprep.subr.mxu0 %v1317
        %1382 = vmatpush1.xpose.msra.mxu0 %v1316
        %1383 = vmatprep.subr.mxu0 %v1319
        %1384 = vmatpush1.xpose.msra.mxu0 %v1318
        %1385 = vmatprep.subr.mxu0 %v1321
        %1386 = vmatpush1.xpose.msra.mxu0 %v1320
        %1387 = vmatprep.subr.mxu0 %v1323
        %1388 = vmatpush1.xpose.msra.mxu0 %v1322
        %1389 = vmatprep.subr.mxu0 %v1325
        %1390 = vmatpush1.xpose.msra.mxu0 %v1324
        %1391 = vmatprep.subr.mxu0 %v1327
        %1392 = vmatpush1.xpose.msra.mxu0 %v1326
        %1393 = vmatprep.subr.mxu0 %v1329
        %1394 = vmatpush1.xpose.msra.mxu0 %v1328
        %1395 = vmatprep.subr.mxu0 %v1331
        %1396 = vmatpush1.xpose.msra.mxu0 %v1330
        %1397 = vmatprep.subr.mxu0 %v1333
        %1398 = vmatpush1.xpose.msra.mxu0 %v1332
        %1399 = vmatprep.subr.mxu0 %v1335
        %1400 = vmatpush1.xpose.msra.mxu0 %v1334
        %1401 = vmatprep.subr.mxu0 %v1337
        %1402 = vmatpush1.xpose.msra.mxu0 %v1336
        %1403 = vmatprep.mubr.f32.mxu0 %v648
        %1404 = vmatmul.mubr.f32.gmra.mrb[0].mxu0 %v646
        %v1405 = vpop.f32.mrb[0].mxu0
        %v1406 = vadd.f32 %v380, %v1405
        %v1407 = vpop.f32.mrb[0].mxu0
        %v1408 = vadd.f32 %v389, %v1407
        %1409 = vdwg.mxu0
        %v1412 = vcombine.low %v1406, %v1408
        %1414 = vst [vmem:[%s348] sm:$0xff] %v1412
        %s1415 = sand.u32 %s211, 1
        %s1416 = scalar_lea.sflag [#allocation3], %s1415
        %s1417 = sand.u32 %s211, 1
        %s1418 = smul.addr %s1417, 8
        %s1419 = scalar_lea.vmem [#allocation2], %s1418
        // Predicated region
        $region49: #{tpu_custom_call.1} parent=47 // pred_check
          %p1420 = pneg %p221
        $region50: #{tpu_custom_call.1} parent=47 // pred_check_branch
          %1422 = sbr.rel (%p1420) target = $region52
        $region51: #{tpu_custom_call.1} parent=47 // pred_region
          %s1423 = smul.u32 2, %s26
          %s1425 = ssub.s32 128, 128
          %1426 = vsyncadd %s1416, %s1425
          %s1427 = smul.addr %s25, 2
          %s1428 = sadd.s32 %s1423, %s1427
          %s1429 = smul.addr %s1428, 64
          %s1430 = scalar_lea.hbm %s7, %s1429
          %s1432 = sshll.u32 %s1419, 4
          %s1433 = int_to_ptr.vmem [resolvable:$true] %s1432
          %1435 = dma.vmem_to_hbm [thread:$0]  %s1433, 128, %s1430, %s1416
        $region52: #{tpu_custom_call.1} parent=47 // pred_fallthru
          _
      $region48: #{tpu_custom_call.1} parent=5 // pred_fallthru
        _
      %p1436 = scmp.le.s32.totalorder 2, %s16
      // Predicated region
      $region53: #{tpu_custom_call.1} parent=5 // pred_check
        %p1437 = pneg %p1436
      $region54: #{tpu_custom_call.1} parent=5 // pred_check_branch
        %1439 = sbr.rel (%p1437) target = $region56
      $region55: #{tpu_custom_call.1} parent=5 // pred_region
        %s1440 = ssub.s32 %s16, 2
        // Predicated region
        $region57: #{tpu_custom_call.1} parent=55 // pred_check
          %p1441 = pneg %p227
        $region58: #{tpu_custom_call.1} parent=55 // pred_check_branch
          %1443 = sbr.rel (%p1441) target = $region60
        $region59: #{tpu_custom_call.1} parent=55 // pred_region
          %s1444 = sand.u32 %s212, 1
          %s1445 = scalar_lea.sflag [#allocation3], %s1444
          %s1446 = sand.u32 %s212, 1
          %s1447 = smul.addr %s1446, 8
          %s1448 = scalar_lea.vmem [#allocation2], %s1447
          %1449 = dma.done %s1445, 128
        $region60: #{tpu_custom_call.1} parent=55 // pred_fallthru
          _
      $region56: #{tpu_custom_call.1} parent=5 // pred_fallthru
        _
    $region6: #{tpu_custom_call.1} parent=1 // loop_footer
      %s20 = sadd.s32 1, %s16
    $region7: #{tpu_custom_call.1} parent=1 // loop_footer_branch
      %15 = sbr.rel target = $region3
    $region8: #{tpu_custom_call.1} parent=1 // loop_exit
      _
    %1450 = vsyncpa [#allocation3], 1
    %s1451 = scalar_lea.sflag [#allocation3], 1
    %1452 = vsyncpa %s1451, 1

</llo_original>
